<compile_context>
chip_gen: v5e
topology: v5e:2x2
jax: 0.10.0
libtpu: 0.0.40
codegen_flags: <defaults>
</compile_context>

<pallas_src>
import jax
import jax.numpy as jnp
from jax import lax
from jax.experimental import pallas as pl
from jax.experimental.pallas import tpu as pltpu

# ---- tiny "bert-base-chinese"-style config (scaled down, TPU-friendly shapes) ----
VOCAB = 64
TYPE_VOCAB = 2
MAX_POS = 16
HIDDEN = 128            # stands in for 768
NUM_LAYERS = 2          # stands in for 12
NUM_HEADS = 4
HEAD_DIM = HIDDEN // NUM_HEADS
INTERMEDIATE = 256      # stands in for 3072
FC_OUT = 32             # stands in for 128 in nn.Linear(768, 128)
FC_PAD = 128            # lane-dense padded fc output width
EPS = 1e-12


def _layernorm(x, gamma, beta):
    mu = jnp.mean(x, axis=-1, keepdims=True)
    var = jnp.mean((x - mu) ** 2, axis=-1, keepdims=True)
    return (x - mu) * lax.rsqrt(var + EPS) * gamma + beta


# ---------------- fused Pallas kernel (one (batch, layer) grid step per call) ----------------

def fused_bert_kernel(emb_ref, kbias_ref, hmask_ref, emb_g_ref, emb_b_ref,
                      wqkv_ref, bqkv_ref, wo_ref, bo_ref, ln1g_ref, ln1b_ref,
                      w1_ref, b1_ref, w2_ref, b2_ref, ln2g_ref, ln2b_ref,
                      wp_ref, bp_ref, wfc_ref, bfc_ref,
                      o_ref, x_scr, ctx_scr):
    l = pl.program_id(1)
    L = pl.num_programs(1)
    S, H = x_scr.shape
    NH = hmask_ref.shape[0]
    HD = H // NH
    scale = 1.0 / (HD ** 0.5)

    # First layer of this batch element: embedding LayerNorm into the persistent scratch.
    @pl.when(l == 0)
    def _():
        x_scr[...] = _layernorm(emb_ref[0].astype(jnp.float32),
                                emb_g_ref[...], emb_b_ref[...])

    x = x_scr[...]                            # (S, H) f32 activations for this sequence
    kbias = kbias_ref[0]                      # (1, S) additive key-padding bias

    # Fused QKV projection: one (S,H) @ (H,3H) matmul, bf16 in / f32 acc.
    qkv = jnp.dot(x.astype(jnp.bfloat16), wqkv_ref[0],
                  preferred_element_type=jnp.float32) + bqkv_ref[0]
    q = qkv[:, :H] * scale                    # softmax scale folded into q (once per layer)
    k_bf = qkv[:, H:2 * H].astype(jnp.bfloat16)
    v = qkv[:, 2 * H:]

    # Multi-head attention via full-width head masking; per-head context accumulates
    # into an f32 VMEM scratch ref.
    ctx_scr[...] = jnp.zeros_like(ctx_scr)

    def head_body(h, carry):
        hm = hmask_ref[pl.ds(h, 1), :]                         # (1, H) one-hot head lanes
        qh = (q * hm).astype(jnp.bfloat16)
        s = lax.dot_general(qh, k_bf, (((1,), (1,)), ((), ())),
                            preferred_element_type=jnp.float32)  # (S, S)
        s = s + kbias
        s = s - jnp.max(s, axis=-1, keepdims=True)
        p = jnp.exp(s)
        p = p * pl.reciprocal(jnp.sum(p, axis=-1, keepdims=True), approx=True)
        ctx_scr[...] += jnp.dot(p.astype(jnp.bfloat16),
                                (v * hm).astype(jnp.bfloat16),
                                preferred_element_type=jnp.float32)
        return carry

    lax.fori_loop(0, NH, head_body, 0, unroll=True)

    attn_out = jnp.dot(ctx_scr[...].astype(jnp.bfloat16), wo_ref[0],
                       preferred_element_type=jnp.float32) + bo_ref[0]
    x = _layernorm(x + attn_out, ln1g_ref[0], ln1b_ref[0])

    # FFN. TODO(synk): jax.nn.gelu uses the tanh approximation; HF BERT uses exact erf GELU.
    h1 = jax.nn.gelu(jnp.dot(x.astype(jnp.bfloat16), w1_ref[0],
                             preferred_element_type=jnp.float32) + b1_ref[0])
    h2 = jnp.dot(h1.astype(jnp.bfloat16), w2_ref[0],
                 preferred_element_type=jnp.float32) + b2_ref[0]
    x = _layernorm(x + h2, ln2g_ref[0], ln2b_ref[0])
    x_scr[...] = x

    # Last layer: pooler on the [CLS] row (row 0) + fc, written to the lane-padded output.
    @pl.when(l == L - 1)
    def _():
        cls = x[0:1, :]                                          # (1, H)
        pooled = jnp.tanh(jnp.dot(cls.astype(jnp.bfloat16), wp_ref[...],
                                  preferred_element_type=jnp.float32) + bp_ref[...])
        # TODO(synk): dropout(p=0.1) after the pooler modeled as identity (inference/eval mode).
        out = jnp.dot(pooled.astype(jnp.bfloat16), wfc_ref[...],
                      preferred_element_type=jnp.float32) + bfc_ref[...]   # (1, FC_PAD)
        o_ref[0] = out.astype(o_ref.dtype)


# ---------------- parameters ----------------

def init_params(key):
    ks = jax.random.split(key, 9)

    def dense(k, shape):
        return jax.random.normal(k, shape, jnp.float32) * 0.02

    L = NUM_LAYERS
    return {
        'word_emb': dense(ks[0], (VOCAB, HIDDEN)),
        'pos_emb': dense(ks[1], (MAX_POS, HIDDEN)),
        'type_emb': dense(ks[2], (TYPE_VOCAB, HIDDEN)),
        'emb_ln_g': jnp.ones((1, HIDDEN), jnp.float32),
        'emb_ln_b': jnp.zeros((1, HIDDEN), jnp.float32),
        # Stacked per-layer weights (leading layer axis); matmul weights in bf16.
        'wqkv': dense(ks[3], (L, HIDDEN, 3 * HIDDEN)).astype(jnp.bfloat16),
        'bqkv': jnp.zeros((L, 1, 3 * HIDDEN), jnp.float32),
        'wo': dense(ks[4], (L, HIDDEN, HIDDEN)).astype(jnp.bfloat16),
        'bo': jnp.zeros((L, 1, HIDDEN), jnp.float32),
        'ln1_g': jnp.ones((L, 1, HIDDEN), jnp.float32),
        'ln1_b': jnp.zeros((L, 1, HIDDEN), jnp.float32),
        'w1': dense(ks[5], (L, HIDDEN, INTERMEDIATE)).astype(jnp.bfloat16),
        'b1': jnp.zeros((L, 1, INTERMEDIATE), jnp.float32),
        'w2': dense(ks[6], (L, INTERMEDIATE, HIDDEN)).astype(jnp.bfloat16),
        'b2': jnp.zeros((L, 1, HIDDEN), jnp.float32),
        'ln2_g': jnp.ones((L, 1, HIDDEN), jnp.float32),
        'ln2_b': jnp.zeros((L, 1, HIDDEN), jnp.float32),
        'pooler_w': dense(ks[7], (HIDDEN, HIDDEN)).astype(jnp.bfloat16),
        'pooler_b': jnp.zeros((1, HIDDEN), jnp.float32),
        # fc weight lane-padded FC_OUT -> FC_PAD with zeros (sliced back in the wrapper).
        'fc_w': jnp.pad(dense(ks[8], (HIDDEN, FC_OUT)),
                        ((0, 0), (0, FC_PAD - FC_OUT))).astype(jnp.bfloat16),
        'fc_b': jnp.zeros((1, FC_PAD), jnp.float32),
    }


# ---------------- forward (glue + single fused, gridded pallas_call) ----------------

def siamese_bert_forward(params, input_ids, attention_mask, token_type_ids=None):
    B, S = input_ids.shape
    if token_type_ids is None:
        token_type_ids = jnp.zeros_like(input_ids)

    # Embedding lookups are glue (gather); sum of word + position + type embeddings.
    emb = (params['word_emb'][input_ids]
           + params['pos_emb'][jnp.arange(S)][None, :, :]
           + params['type_emb'][token_type_ids])                          # (B, S, H)

    # Per-batch additive key-padding bias, O(B*S). (The old quadratic (B*S, B*S)
    # bias is gone; batch separation now comes from the batch grid axis.)
    kbias = jnp.where(attention_mask > 0, 0.0, -1e9).astype(jnp.float32).reshape(B, 1, S)

    # One-hot head lane masks for the full-width multi-head trick.
    lane = jnp.arange(HIDDEN)
    head_masks = (lane[None, :] // HEAD_DIM
                  == jnp.arange(NUM_HEADS)[:, None]).astype(jnp.float32)   # (NH, H)

    L = NUM_LAYERS
    layer3 = lambda b, l: (l, 0, 0)       # stream stacked layer weights along the layer axis
    fixed2 = lambda b, l: (0, 0)          # small shared params stay resident

    grid_spec = pltpu.PrefetchScalarGridSpec(
        num_scalar_prefetch=0,
        grid=(B, L),
        in_specs=[
            pl.BlockSpec((1, S, HIDDEN), lambda b, l: (b, 0, 0)),          # emb
            pl.BlockSpec((1, 1, S), lambda b, l: (b, 0, 0)),               # key-padding bias
            pl.BlockSpec((NUM_HEADS, HIDDEN), fixed2),                     # head masks
            pl.BlockSpec((1, HIDDEN), fixed2),                             # emb LN gamma
            pl.BlockSpec((1, HIDDEN), fixed2),                             # emb LN beta
            pl.BlockSpec((1, HIDDEN, 3 * HIDDEN), layer3),                 # wqkv
            pl.BlockSpec((1, 1, 3 * HIDDEN), layer3),                      # bqkv
            pl.BlockSpec((1, HIDDEN, HIDDEN), layer3),                     # wo
            pl.BlockSpec((1, 1, HIDDEN), layer3),                          # bo
            pl.BlockSpec((1, 1, HIDDEN), layer3),                          # ln1 gamma
            pl.BlockSpec((1, 1, HIDDEN), layer3),                          # ln1 beta
            pl.BlockSpec((1, HIDDEN, INTERMEDIATE), layer3),               # w1
            pl.BlockSpec((1, 1, INTERMEDIATE), layer3),                    # b1
            pl.BlockSpec((1, INTERMEDIATE, HIDDEN), layer3),               # w2
            pl.BlockSpec((1, 1, HIDDEN), layer3),                          # b2
            pl.BlockSpec((1, 1, HIDDEN), layer3),                          # ln2 gamma
            pl.BlockSpec((1, 1, HIDDEN), layer3),                          # ln2 beta
            pl.BlockSpec((HIDDEN, HIDDEN), fixed2),                        # pooler w
            pl.BlockSpec((1, HIDDEN), fixed2),                             # pooler b
            pl.BlockSpec((HIDDEN, FC_PAD), fixed2),                        # fc w (lane-padded)
            pl.BlockSpec((1, FC_PAD), fixed2),                             # fc b (lane-padded)
        ],
        out_specs=pl.BlockSpec((1, 1, FC_PAD), lambda b, l: (b, 0, 0)),
        scratch_shapes=[pltpu.VMEM((S, HIDDEN), jnp.float32),   # persistent activations x
                        pltpu.VMEM((S, HIDDEN), jnp.float32)],  # per-head context accumulator
    )

    out_pad = pl.pallas_call(
        fused_bert_kernel,
        out_shape=jax.ShapeDtypeStruct((B, 1, FC_PAD), jnp.float32),
        grid_spec=grid_spec,
        compiler_params=pltpu.CompilerParams(
            dimension_semantics=("parallel", "arbitrary"),   # batch parallel (megacore), layer serial
            vmem_limit_bytes=32 * 1024 * 1024),
    )(emb, kbias, head_masks,
      params['emb_ln_g'], params['emb_ln_b'],
      params['wqkv'], params['bqkv'], params['wo'], params['bo'],
      params['ln1_g'], params['ln1_b'],
      params['w1'], params['b1'], params['w2'], params['b2'],
      params['ln2_g'], params['ln2_b'],
      params['pooler_w'], params['pooler_b'],
      params['fc_w'], params['fc_b'])

    return out_pad[:, 0, :FC_OUT]


if __name__ == "__main__":
    key = jax.random.PRNGKey(0)
    pkey, ikey = jax.random.split(key)
    params = init_params(pkey)

    B, S = 2, 8
    input_ids = jax.random.randint(ikey, (B, S), 0, VOCAB, dtype=jnp.int32)
    attention_mask = jnp.ones((B, S), jnp.int32).at[1, 6:].set(0)   # second sequence padded
    token_type_ids = jnp.zeros((B, S), jnp.int32)

    out = siamese_bert_forward(params, input_ids, attention_mask, token_type_ids)
    out = jax.block_until_ready(out)
    assert out.shape == (B, FC_OUT) and out.dtype == jnp.float32
    assert bool(jnp.all(jnp.isfinite(out)))
    print("KERNEL_OK")
</pallas_src>

<mosaic_0001>
module attributes {stable_mosaic.version = 11 : i64} {
  func.func @fused_bert_kernel(%arg0: i32, %arg1: i32, %arg2: memref<1x8x128xf32, #tpu.memory_space<vmem>>, %arg3: memref<1x1x8xf32, #tpu.memory_space<vmem>>, %arg4: memref<4x128xf32, #tpu.memory_space<vmem>>, %arg5: memref<1x128xf32, #tpu.memory_space<vmem>>, %arg6: memref<1x128xf32, #tpu.memory_space<vmem>>, %arg7: memref<1x128x384xbf16, #tpu.memory_space<vmem>>, %arg8: memref<1x1x384xf32, #tpu.memory_space<vmem>>, %arg9: memref<1x128x128xbf16, #tpu.memory_space<vmem>>, %arg10: memref<1x1x128xf32, #tpu.memory_space<vmem>>, %arg11: memref<1x1x128xf32, #tpu.memory_space<vmem>>, %arg12: memref<1x1x128xf32, #tpu.memory_space<vmem>>, %arg13: memref<1x128x256xbf16, #tpu.memory_space<vmem>>, %arg14: memref<1x1x256xf32, #tpu.memory_space<vmem>>, %arg15: memref<1x256x128xbf16, #tpu.memory_space<vmem>>, %arg16: memref<1x1x128xf32, #tpu.memory_space<vmem>>, %arg17: memref<1x1x128xf32, #tpu.memory_space<vmem>>, %arg18: memref<1x1x128xf32, #tpu.memory_space<vmem>>, %arg19: memref<128x128xbf16, #tpu.memory_space<vmem>>, %arg20: memref<1x128xf32, #tpu.memory_space<vmem>>, %arg21: memref<128x128xbf16, #tpu.memory_space<vmem>>, %arg22: memref<1x128xf32, #tpu.memory_space<vmem>>, %arg23: memref<1x1x128xf32, #tpu.memory_space<vmem>>, %arg24: memref<8x128xf32, #tpu.memory_space<vmem>>, %arg25: memref<8x128xf32, #tpu.memory_space<vmem>>) attributes {dimension_semantics = [#tpu.dimension_semantics<parallel>, #tpu.dimension_semantics<arbitrary>], iteration_bounds = array<i64: 2, 2>, scalar_prefetch = 0 : i64, scratch_operands = 2 : i64, tpu.core_type = #tpu.core_type<tc>, window_params = [{transform_indices = @transform_0, window_bounds = array<i64: 1, 8, 128>}, {transform_indices = @transform_1, window_bounds = array<i64: 1, 1, 8>}, {pipeline_mode = #tpu.pipeline_mode<synchronous>, transform_indices = @transform_2, window_bounds = array<i64: 4, 128>}, {pipeline_mode = #tpu.pipeline_mode<synchronous>, transform_indices = @transform_3, window_bounds = array<i64: 1, 128>}, {pipeline_mode = #tpu.pipeline_mode<synchronous>, transform_indices = @transform_4, window_bounds = array<i64: 1, 128>}, {transform_indices = @transform_5, window_bounds = array<i64: 1, 128, 384>}, {transform_indices = @transform_6, window_bounds = array<i64: 1, 1, 384>}, {transform_indices = @transform_7, window_bounds = array<i64: 1, 128, 128>}, {transform_indices = @transform_8, window_bounds = array<i64: 1, 1, 128>}, {transform_indices = @transform_9, window_bounds = array<i64: 1, 1, 128>}, {transform_indices = @transform_10, window_bounds = array<i64: 1, 1, 128>}, {transform_indices = @transform_11, window_bounds = array<i64: 1, 128, 256>}, {transform_indices = @transform_12, window_bounds = array<i64: 1, 1, 256>}, {transform_indices = @transform_13, window_bounds = array<i64: 1, 256, 128>}, {transform_indices = @transform_14, window_bounds = array<i64: 1, 1, 128>}, {transform_indices = @transform_15, window_bounds = array<i64: 1, 1, 128>}, {transform_indices = @transform_16, window_bounds = array<i64: 1, 1, 128>}, {pipeline_mode = #tpu.pipeline_mode<synchronous>, transform_indices = @transform_17, window_bounds = array<i64: 128, 128>}, {pipeline_mode = #tpu.pipeline_mode<synchronous>, transform_indices = @transform_18, window_bounds = array<i64: 1, 128>}, {pipeline_mode = #tpu.pipeline_mode<synchronous>, transform_indices = @transform_19, window_bounds = array<i64: 128, 128>}, {pipeline_mode = #tpu.pipeline_mode<synchronous>, transform_indices = @transform_20, window_bounds = array<i64: 1, 128>}, {transform_indices = @transform_21, window_bounds = array<i64: 1, 1, 128>}]} {
    %c0_i32 = arith.constant 0 : i32
    %0 = arith.cmpi eq, %arg1, %c0_i32 : i32
    %1 = arith.extui %0 : i1 to i32
    %c0_i32_0 = arith.constant 0 : i32
    %2 = arith.cmpi ne, %1, %c0_i32_0 : i32
    scf.if %2 {
      %c0_105 = arith.constant 0 : index
      %c0_106 = arith.constant 0 : index
      %c0_107 = arith.constant 0 : index
      %222 = vector.load %arg2[%c0_105, %c0_106, %c0_107] : memref<1x8x128xf32, #tpu.memory_space<vmem>>, vector<1x8x128xf32>
      %223 = vector.shape_cast %222 : vector<1x8x128xf32> to vector<8x128xf32>
      %c0_108 = arith.constant 0 : index
      %c0_109 = arith.constant 0 : index
      %224 = vector.load %arg5[%c0_108, %c0_109] : memref<1x128xf32, #tpu.memory_space<vmem>>, vector<1x128xf32>
      %c0_110 = arith.constant 0 : index
      %c0_111 = arith.constant 0 : index
      %225 = vector.load %arg6[%c0_110, %c0_111] : memref<1x128xf32, #tpu.memory_space<vmem>>, vector<1x128xf32>
      %cst_112 = arith.constant dense<0.000000e+00> : vector<8xf32>
      %226 = vector.multi_reduction <add>, %223, %cst_112 [1] : vector<8x128xf32> to vector<8xf32>
      %227 = vector.shape_cast %226 : vector<8xf32> to vector<8x1xf32>
      %cst_113 = arith.constant 1.280000e+02 : f32
      %228 = vector.broadcast %cst_113 : f32 to vector<8x1xf32>
      %229 = arith.divf %227, %228 : vector<8x1xf32>
      %230 = vector.broadcast %229 : vector<8x1xf32> to vector<8x128xf32>
      %231 = arith.subf %223, %230 : vector<8x128xf32>
      %232 = arith.mulf %231, %231 : vector<8x128xf32>
      %cst_114 = arith.constant dense<0.000000e+00> : vector<8xf32>
      %233 = vector.multi_reduction <add>, %232, %cst_114 [1] : vector<8x128xf32> to vector<8xf32>
      %234 = vector.shape_cast %233 : vector<8xf32> to vector<8x1xf32>
      %cst_115 = arith.constant 1.280000e+02 : f32
      %235 = vector.broadcast %cst_115 : f32 to vector<8x1xf32>
      %236 = arith.divf %234, %235 : vector<8x1xf32>
      %237 = vector.broadcast %229 : vector<8x1xf32> to vector<8x128xf32>
      %238 = arith.subf %223, %237 : vector<8x128xf32>
      %cst_116 = arith.constant 9.99999996E-13 : f32
      %239 = vector.broadcast %cst_116 : f32 to vector<8x1xf32>
      %240 = arith.addf %236, %239 : vector<8x1xf32>
      %241 = math.rsqrt %240 : vector<8x1xf32>
      %242 = vector.broadcast %241 : vector<8x1xf32> to vector<8x128xf32>
      %243 = arith.mulf %238, %242 : vector<8x128xf32>
      %244 = vector.broadcast %224 : vector<1x128xf32> to vector<8x128xf32>
      %245 = arith.mulf %243, %244 : vector<8x128xf32>
      %246 = vector.broadcast %225 : vector<1x128xf32> to vector<8x128xf32>
      %247 = arith.addf %245, %246 : vector<8x128xf32>
      %c0_117 = arith.constant 0 : index
      %c0_118 = arith.constant 0 : index
      %248 = vector.load %arg24[%c0_117, %c0_118] : memref<8x128xf32, #tpu.memory_space<vmem>>, vector<8x128xf32>
      tpu.vector_store %arg24[%c0_117, %c0_118], %247 {strides = array<i32>} : memref<8x128xf32, #tpu.memory_space<vmem>>, vector<8x128xf32>,
    } else {
    }
    %c0 = arith.constant 0 : index
    %c0_1 = arith.constant 0 : index
    %3 = vector.load %arg24[%c0, %c0_1] : memref<8x128xf32, #tpu.memory_space<vmem>>, vector<8x128xf32>
    %c0_2 = arith.constant 0 : index
    %c0_3 = arith.constant 0 : index
    %c0_4 = arith.constant 0 : index
    %4 = vector.load %arg3[%c0_2, %c0_3, %c0_4] : memref<1x1x8xf32, #tpu.memory_space<vmem>>, vector<1x1x8xf32>
    %5 = vector.shape_cast %4 : vector<1x1x8xf32> to vector<1x8xf32>
    %6 = arith.truncf %3 : vector<8x128xf32> to vector<8x128xbf16>
    %c0_5 = arith.constant 0 : index
    %c0_6 = arith.constant 0 : index
    %c0_7 = arith.constant 0 : index
    %7 = vector.load %arg7[%c0_5, %c0_6, %c0_7] : memref<1x128x384xbf16, #tpu.memory_space<vmem>>, vector<1x128x384xbf16>
    %8 = vector.shape_cast %7 : vector<1x128x384xbf16> to vector<128x384xbf16>
    %cst = arith.constant dense<0.000000e+00> : vector<8x384xf32>
    %9 = tpu.matmul %6, %8, %cst {dimension_numbers = #tpu.dot_dimension_numbers<[1], [0], [0], [1], [0, 0, 1, 1], [], []>} : vector<8x128xbf16>, vector<128x384xbf16>, vector<8x384xf32> -> vector<8x384xf32>
    %c0_8 = arith.constant 0 : index
    %c0_9 = arith.constant 0 : index
    %c0_10 = arith.constant 0 : index
    %10 = vector.load %arg8[%c0_8, %c0_9, %c0_10] : memref<1x1x384xf32, #tpu.memory_space<vmem>>, vector<1x1x384xf32>
    %11 = vector.shape_cast %10 : vector<1x1x384xf32> to vector<1x384xf32>
    %12 = vector.broadcast %11 : vector<1x384xf32> to vector<8x384xf32>
    %13 = arith.addf %9, %12 : vector<8x384xf32>
    %14 = vector.extract_strided_slice %13 {offsets = [0, 0], sizes = [8, 128], strides = [1, 1]} : vector<8x384xf32> to vector<8x128xf32>
    %cst_11 = arith.constant 0.176776692 : f32
    %15 = vector.broadcast %cst_11 : f32 to vector<8x128xf32>
    %16 = arith.mulf %14, %15 : vector<8x128xf32>
    %17 = vector.extract_strided_slice %13 {offsets = [0, 128], sizes = [8, 128], strides = [1, 1]} : vector<8x384xf32> to vector<8x128xf32>
    %18 = arith.truncf %17 : vector<8x128xf32> to vector<8x128xbf16>
    %19 = vector.extract_strided_slice %13 {offsets = [0, 256], sizes = [8, 128], strides = [1, 1]} : vector<8x384xf32> to vector<8x128xf32>
    %cst_12 = arith.constant 0.000000e+00 : f32
    %20 = vector.broadcast %cst_12 : f32 to vector<8x128xf32>
    %c0_13 = arith.constant 0 : index
    %c0_14 = arith.constant 0 : index
    %21 = vector.load %arg25[%c0_13, %c0_14] : memref<8x128xf32, #tpu.memory_space<vmem>>, vector<8x128xf32>
    tpu.vector_store %arg25[%c0_13, %c0_14], %20 {strides = array<i32>} : memref<8x128xf32, #tpu.memory_space<vmem>>, vector<8x128xf32>,
    %c0_i32_15 = arith.constant 0 : i32
    %22 = arith.index_cast %c0_i32_15 : i32 to index
    %c0_16 = arith.constant 0 : index
    %23 = vector.load %arg4[%22, %c0_16] : memref<4x128xf32, #tpu.memory_space<vmem>>, vector<1x128xf32>
    %24 = vector.broadcast %23 : vector<1x128xf32> to vector<8x128xf32>
    %25 = arith.mulf %16, %24 : vector<8x128xf32>
    %26 = arith.truncf %25 : vector<8x128xf32> to vector<8x128xbf16>
    %cst_17 = arith.constant dense<0.000000e+00> : vector<8x8xf32>
    %27 = tpu.matmul %26, %18, %cst_17 {dimension_numbers = #tpu.dot_dimension_numbers<[1], [1], [0], [0], [0, 0, 1, 0], [], []>} : vector<8x128xbf16>, vector<8x128xbf16>, vector<8x8xf32> -> vector<8x8xf32>
    %28 = vector.broadcast %5 : vector<1x8xf32> to vector<8x8xf32>
    %29 = arith.addf %27, %28 : vector<8x8xf32>
    %cst_18 = arith.constant dense<0xFF800000> : vector<8xf32>
    %30 = vector.multi_reduction <maximumf>, %29, %cst_18 [1] : vector<8x8xf32> to vector<8xf32>
    %31 = vector.shape_cast %30 : vector<8xf32> to vector<8x1xf32>
    %32 = vector.broadcast %31 : vector<8x1xf32> to vector<8x8xf32>
    %33 = arith.subf %29, %32 : vector<8x8xf32>
    %34 = math.exp %33 : vector<8x8xf32>
    %cst_19 = arith.constant dense<0.000000e+00> : vector<8xf32>
    %35 = vector.multi_reduction <add>, %34, %cst_19 [1] : vector<8x8xf32> to vector<8xf32>
    %36 = vector.shape_cast %35 : vector<8xf32> to vector<8x1xf32>
    %37 = tpu.reciprocal %36 {approx = true} : vector<8x1xf32> -> vector<8x1xf32>
    %38 = vector.broadcast %37 : vector<8x1xf32> to vector<8x8xf32>
    %39 = arith.mulf %34, %38 : vector<8x8xf32>
    %c0_20 = arith.constant 0 : index
    %c0_21 = arith.constant 0 : index
    %40 = vector.load %arg25[%c0_20, %c0_21] : memref<8x128xf32, #tpu.memory_space<vmem>>, vector<8x128xf32>
    %41 = arith.truncf %39 : vector<8x8xf32> to vector<8x8xbf16>
    %42 = vector.broadcast %23 : vector<1x128xf32> to vector<8x128xf32>
    %43 = arith.mulf %19, %42 : vector<8x128xf32>
    %44 = arith.truncf %43 : vector<8x128xf32> to vector<8x128xbf16>
    %cst_22 = arith.constant dense<0.000000e+00> : vector<8x128xf32>
    %45 = tpu.matmul %41, %44, %cst_22 {dimension_numbers = #tpu.dot_dimension_numbers<[1], [0], [0], [1], [0, 0, 1, 1], [], []>} : vector<8x8xbf16>, vector<8x128xbf16>, vector<8x128xf32> -> vector<8x128xf32>
    %46 = arith.addf %40, %45 : vector<8x128xf32>
    %c0_23 = arith.constant 0 : index
    %c0_24 = arith.constant 0 : index
    %47 = vector.load %arg25[%c0_23, %c0_24] : memref<8x128xf32, #tpu.memory_space<vmem>>, vector<8x128xf32>
    tpu.vector_store %arg25[%c0_23, %c0_24], %46 {strides = array<i32>} : memref<8x128xf32, #tpu.memory_space<vmem>>, vector<8x128xf32>,
    %c1_i32 = arith.constant 1 : i32
    %48 = arith.index_cast %c1_i32 : i32 to index
    %c0_25 = arith.constant 0 : index
    %49 = vector.load %arg4[%48, %c0_25] : memref<4x128xf32, #tpu.memory_space<vmem>>, vector<1x128xf32>
    %50 = vector.broadcast %49 : vector<1x128xf32> to vector<8x128xf32>
    %51 = arith.mulf %16, %50 : vector<8x128xf32>
    %52 = arith.truncf %51 : vector<8x128xf32> to vector<8x128xbf16>
    %cst_26 = arith.constant dense<0.000000e+00> : vector<8x8xf32>
    %53 = tpu.matmul %52, %18, %cst_26 {dimension_numbers = #tpu.dot_dimension_numbers<[1], [1], [0], [0], [0, 0, 1, 0], [], []>} : vector<8x128xbf16>, vector<8x128xbf16>, vector<8x8xf32> -> vector<8x8xf32>
    %54 = vector.broadcast %5 : vector<1x8xf32> to vector<8x8xf32>
    %55 = arith.addf %53, %54 : vector<8x8xf32>
    %cst_27 = arith.constant dense<0xFF800000> : vector<8xf32>
    %56 = vector.multi_reduction <maximumf>, %55, %cst_27 [1] : vector<8x8xf32> to vector<8xf32>
    %57 = vector.shape_cast %56 : vector<8xf32> to vector<8x1xf32>
    %58 = vector.broadcast %57 : vector<8x1xf32> to vector<8x8xf32>
    %59 = arith.subf %55, %58 : vector<8x8xf32>
    %60 = math.exp %59 : vector<8x8xf32>
    %cst_28 = arith.constant dense<0.000000e+00> : vector<8xf32>
    %61 = vector.multi_reduction <add>, %60, %cst_28 [1] : vector<8x8xf32> to vector<8xf32>
    %62 = vector.shape_cast %61 : vector<8xf32> to vector<8x1xf32>
    %63 = tpu.reciprocal %62 {approx = true} : vector<8x1xf32> -> vector<8x1xf32>
    %64 = vector.broadcast %63 : vector<8x1xf32> to vector<8x8xf32>
    %65 = arith.mulf %60, %64 : vector<8x8xf32>
    %c0_29 = arith.constant 0 : index
    %c0_30 = arith.constant 0 : index
    %66 = vector.load %arg25[%c0_29, %c0_30] : memref<8x128xf32, #tpu.memory_space<vmem>>, vector<8x128xf32>
    %67 = arith.truncf %65 : vector<8x8xf32> to vector<8x8xbf16>
    %68 = vector.broadcast %49 : vector<1x128xf32> to vector<8x128xf32>
    %69 = arith.mulf %19, %68 : vector<8x128xf32>
    %70 = arith.truncf %69 : vector<8x128xf32> to vector<8x128xbf16>
    %cst_31 = arith.constant dense<0.000000e+00> : vector<8x128xf32>
    %71 = tpu.matmul %67, %70, %cst_31 {dimension_numbers = #tpu.dot_dimension_numbers<[1], [0], [0], [1], [0, 0, 1, 1], [], []>} : vector<8x8xbf16>, vector<8x128xbf16>, vector<8x128xf32> -> vector<8x128xf32>
    %72 = arith.addf %66, %71 : vector<8x128xf32>
    %c0_32 = arith.constant 0 : index
    %c0_33 = arith.constant 0 : index
    %73 = vector.load %arg25[%c0_32, %c0_33] : memref<8x128xf32, #tpu.memory_space<vmem>>, vector<8x128xf32>
    tpu.vector_store %arg25[%c0_32, %c0_33], %72 {strides = array<i32>} : memref<8x128xf32, #tpu.memory_space<vmem>>, vector<8x128xf32>,
    %c2_i32 = arith.constant 2 : i32
    %74 = arith.index_cast %c2_i32 : i32 to index
    %c0_34 = arith.constant 0 : index
    %75 = vector.load %arg4[%74, %c0_34] : memref<4x128xf32, #tpu.memory_space<vmem>>, vector<1x128xf32>
    %76 = vector.broadcast %75 : vector<1x128xf32> to vector<8x128xf32>
    %77 = arith.mulf %16, %76 : vector<8x128xf32>
    %78 = arith.truncf %77 : vector<8x128xf32> to vector<8x128xbf16>
    %cst_35 = arith.constant dense<0.000000e+00> : vector<8x8xf32>
    %79 = tpu.matmul %78, %18, %cst_35 {dimension_numbers = #tpu.dot_dimension_numbers<[1], [1], [0], [0], [0, 0, 1, 0], [], []>} : vector<8x128xbf16>, vector<8x128xbf16>, vector<8x8xf32> -> vector<8x8xf32>
    %80 = vector.broadcast %5 : vector<1x8xf32> to vector<8x8xf32>
    %81 = arith.addf %79, %80 : vector<8x8xf32>
    %cst_36 = arith.constant dense<0xFF800000> : vector<8xf32>
    %82 = vector.multi_reduction <maximumf>, %81, %cst_36 [1] : vector<8x8xf32> to vector<8xf32>
    %83 = vector.shape_cast %82 : vector<8xf32> to vector<8x1xf32>
    %84 = vector.broadcast %83 : vector<8x1xf32> to vector<8x8xf32>
    %85 = arith.subf %81, %84 : vector<8x8xf32>
    %86 = math.exp %85 : vector<8x8xf32>
    %cst_37 = arith.constant dense<0.000000e+00> : vector<8xf32>
    %87 = vector.multi_reduction <add>, %86, %cst_37 [1] : vector<8x8xf32> to vector<8xf32>
    %88 = vector.shape_cast %87 : vector<8xf32> to vector<8x1xf32>
    %89 = tpu.reciprocal %88 {approx = true} : vector<8x1xf32> -> vector<8x1xf32>
    %90 = vector.broadcast %89 : vector<8x1xf32> to vector<8x8xf32>
    %91 = arith.mulf %86, %90 : vector<8x8xf32>
    %c0_38 = arith.constant 0 : index
    %c0_39 = arith.constant 0 : index
    %92 = vector.load %arg25[%c0_38, %c0_39] : memref<8x128xf32, #tpu.memory_space<vmem>>, vector<8x128xf32>
    %93 = arith.truncf %91 : vector<8x8xf32> to vector<8x8xbf16>
    %94 = vector.broadcast %75 : vector<1x128xf32> to vector<8x128xf32>
    %95 = arith.mulf %19, %94 : vector<8x128xf32>
    %96 = arith.truncf %95 : vector<8x128xf32> to vector<8x128xbf16>
    %cst_40 = arith.constant dense<0.000000e+00> : vector<8x128xf32>
    %97 = tpu.matmul %93, %96, %cst_40 {dimension_numbers = #tpu.dot_dimension_numbers<[1], [0], [0], [1], [0, 0, 1, 1], [], []>} : vector<8x8xbf16>, vector<8x128xbf16>, vector<8x128xf32> -> vector<8x128xf32>
    %98 = arith.addf %92, %97 : vector<8x128xf32>
    %c0_41 = arith.constant 0 : index
    %c0_42 = arith.constant 0 : index
    %99 = vector.load %arg25[%c0_41, %c0_42] : memref<8x128xf32, #tpu.memory_space<vmem>>, vector<8x128xf32>
    tpu.vector_store %arg25[%c0_41, %c0_42], %98 {strides = array<i32>} : memref<8x128xf32, #tpu.memory_space<vmem>>, vector<8x128xf32>,
    %c3_i32 = arith.constant 3 : i32
    %100 = arith.index_cast %c3_i32 : i32 to index
    %c0_43 = arith.constant 0 : index
    %101 = vector.load %arg4[%100, %c0_43] : memref<4x128xf32, #tpu.memory_space<vmem>>, vector<1x128xf32>
    %102 = vector.broadcast %101 : vector<1x128xf32> to vector<8x128xf32>
    %103 = arith.mulf %16, %102 : vector<8x128xf32>
    %104 = arith.truncf %103 : vector<8x128xf32> to vector<8x128xbf16>
    %cst_44 = arith.constant dense<0.000000e+00> : vector<8x8xf32>
    %105 = tpu.matmul %104, %18, %cst_44 {dimension_numbers = #tpu.dot_dimension_numbers<[1], [1], [0], [0], [0, 0, 1, 0], [], []>} : vector<8x128xbf16>, vector<8x128xbf16>, vector<8x8xf32> -> vector<8x8xf32>
    %106 = vector.broadcast %5 : vector<1x8xf32> to vector<8x8xf32>
    %107 = arith.addf %105, %106 : vector<8x8xf32>
    %cst_45 = arith.constant dense<0xFF800000> : vector<8xf32>
    %108 = vector.multi_reduction <maximumf>, %107, %cst_45 [1] : vector<8x8xf32> to vector<8xf32>
    %109 = vector.shape_cast %108 : vector<8xf32> to vector<8x1xf32>
    %110 = vector.broadcast %109 : vector<8x1xf32> to vector<8x8xf32>
    %111 = arith.subf %107, %110 : vector<8x8xf32>
    %112 = math.exp %111 : vector<8x8xf32>
    %cst_46 = arith.constant dense<0.000000e+00> : vector<8xf32>
    %113 = vector.multi_reduction <add>, %112, %cst_46 [1] : vector<8x8xf32> to vector<8xf32>
    %114 = vector.shape_cast %113 : vector<8xf32> to vector<8x1xf32>
    %115 = tpu.reciprocal %114 {approx = true} : vector<8x1xf32> -> vector<8x1xf32>
    %116 = vector.broadcast %115 : vector<8x1xf32> to vector<8x8xf32>
    %117 = arith.mulf %112, %116 : vector<8x8xf32>
    %c0_47 = arith.constant 0 : index
    %c0_48 = arith.constant 0 : index
    %118 = vector.load %arg25[%c0_47, %c0_48] : memref<8x128xf32, #tpu.memory_space<vmem>>, vector<8x128xf32>
    %119 = arith.truncf %117 : vector<8x8xf32> to vector<8x8xbf16>
    %120 = vector.broadcast %101 : vector<1x128xf32> to vector<8x128xf32>
    %121 = arith.mulf %19, %120 : vector<8x128xf32>
    %122 = arith.truncf %121 : vector<8x128xf32> to vector<8x128xbf16>
    %cst_49 = arith.constant dense<0.000000e+00> : vector<8x128xf32>
    %123 = tpu.matmul %119, %122, %cst_49 {dimension_numbers = #tpu.dot_dimension_numbers<[1], [0], [0], [1], [0, 0, 1, 1], [], []>} : vector<8x8xbf16>, vector<8x128xbf16>, vector<8x128xf32> -> vector<8x128xf32>
    %124 = arith.addf %118, %123 : vector<8x128xf32>
    %c0_50 = arith.constant 0 : index
    %c0_51 = arith.constant 0 : index
    %125 = vector.load %arg25[%c0_50, %c0_51] : memref<8x128xf32, #tpu.memory_space<vmem>>, vector<8x128xf32>
    tpu.vector_store %arg25[%c0_50, %c0_51], %124 {strides = array<i32>} : memref<8x128xf32, #tpu.memory_space<vmem>>, vector<8x128xf32>,
    %c4_i32 = arith.constant 4 : i32
    %c0_52 = arith.constant 0 : index
    %c0_53 = arith.constant 0 : index
    %126 = vector.load %arg25[%c0_52, %c0_53] : memref<8x128xf32, #tpu.memory_space<vmem>>, vector<8x128xf32>
    %127 = arith.truncf %126 : vector<8x128xf32> to vector<8x128xbf16>
    %c0_54 = arith.constant 0 : index
    %c0_55 = arith.constant 0 : index
    %c0_56 = arith.constant 0 : index
    %128 = vector.load %arg9[%c0_54, %c0_55, %c0_56] : memref<1x128x128xbf16, #tpu.memory_space<vmem>>, vector<1x128x128xbf16>
    %129 = vector.shape_cast %128 : vector<1x128x128xbf16> to vector<128x128xbf16>
    %cst_57 = arith.constant dense<0.000000e+00> : vector<8x128xf32>
    %130 = tpu.matmul %127, %129, %cst_57 {dimension_numbers = #tpu.dot_dimension_numbers<[1], [0], [0], [1], [0, 0, 1, 1], [], []>} : vector<8x128xbf16>, vector<128x128xbf16>, vector<8x128xf32> -> vector<8x128xf32>
    %c0_58 = arith.constant 0 : index
    %c0_59 = arith.constant 0 : index
    %c0_60 = arith.constant 0 : index
    %131 = vector.load %arg10[%c0_58, %c0_59, %c0_60] : memref<1x1x128xf32, #tpu.memory_space<vmem>>, vector<1x1x128xf32>
    %132 = vector.shape_cast %131 : vector<1x1x128xf32> to vector<1x128xf32>
    %133 = vector.broadcast %132 : vector<1x128xf32> to vector<8x128xf32>
    %134 = arith.addf %130, %133 : vector<8x128xf32>
    %135 = arith.addf %3, %134 : vector<8x128xf32>
    %c0_61 = arith.constant 0 : index
    %c0_62 = arith.constant 0 : index
    %c0_63 = arith.constant 0 : index
    %136 = vector.load %arg11[%c0_61, %c0_62, %c0_63] : memref<1x1x128xf32, #tpu.memory_space<vmem>>, vector<1x1x128xf32>
    %137 = vector.shape_cast %136 : vector<1x1x128xf32> to vector<1x128xf32>
    %c0_64 = arith.constant 0 : index
    %c0_65 = arith.constant 0 : index
    %c0_66 = arith.constant 0 : index
    %138 = vector.load %arg12[%c0_64, %c0_65, %c0_66] : memref<1x1x128xf32, #tpu.memory_space<vmem>>, vector<1x1x128xf32>
    %139 = vector.shape_cast %138 : vector<1x1x128xf32> to vector<1x128xf32>
    %cst_67 = arith.constant dense<0.000000e+00> : vector<8xf32>
    %140 = vector.multi_reduction <add>, %135, %cst_67 [1] : vector<8x128xf32> to vector<8xf32>
    %141 = vector.shape_cast %140 : vector<8xf32> to vector<8x1xf32>
    %cst_68 = arith.constant 1.280000e+02 : f32
    %142 = vector.broadcast %cst_68 : f32 to vector<8x1xf32>
    %143 = arith.divf %141, %142 : vector<8x1xf32>
    %144 = vector.broadcast %143 : vector<8x1xf32> to vector<8x128xf32>
    %145 = arith.subf %135, %144 : vector<8x128xf32>
    %146 = arith.mulf %145, %145 : vector<8x128xf32>
    %cst_69 = arith.constant dense<0.000000e+00> : vector<8xf32>
    %147 = vector.multi_reduction <add>, %146, %cst_69 [1] : vector<8x128xf32> to vector<8xf32>
    %148 = vector.shape_cast %147 : vector<8xf32> to vector<8x1xf32>
    %cst_70 = arith.constant 1.280000e+02 : f32
    %149 = vector.broadcast %cst_70 : f32 to vector<8x1xf32>
    %150 = arith.divf %148, %149 : vector<8x1xf32>
    %151 = vector.broadcast %143 : vector<8x1xf32> to vector<8x128xf32>
    %152 = arith.subf %135, %151 : vector<8x128xf32>
    %cst_71 = arith.constant 9.99999996E-13 : f32
    %153 = vector.broadcast %cst_71 : f32 to vector<8x1xf32>
    %154 = arith.addf %150, %153 : vector<8x1xf32>
    %155 = math.rsqrt %154 : vector<8x1xf32>
    %156 = vector.broadcast %155 : vector<8x1xf32> to vector<8x128xf32>
    %157 = arith.mulf %152, %156 : vector<8x128xf32>
    %158 = vector.broadcast %137 : vector<1x128xf32> to vector<8x128xf32>
    %159 = arith.mulf %157, %158 : vector<8x128xf32>
    %160 = vector.broadcast %139 : vector<1x128xf32> to vector<8x128xf32>
    %161 = arith.addf %159, %160 : vector<8x128xf32>
    %162 = arith.truncf %161 : vector<8x128xf32> to vector<8x128xbf16>
    %c0_72 = arith.constant 0 : index
    %c0_73 = arith.constant 0 : index
    %c0_74 = arith.constant 0 : index
    %163 = vector.load %arg13[%c0_72, %c0_73, %c0_74] : memref<1x128x256xbf16, #tpu.memory_space<vmem>>, vector<1x128x256xbf16>
    %164 = vector.shape_cast %163 : vector<1x128x256xbf16> to vector<128x256xbf16>
    %cst_75 = arith.constant dense<0.000000e+00> : vector<8x256xf32>
    %165 = tpu.matmul %162, %164, %cst_75 {dimension_numbers = #tpu.dot_dimension_numbers<[1], [0], [0], [1], [0, 0, 1, 1], [], []>} : vector<8x128xbf16>, vector<128x256xbf16>, vector<8x256xf32> -> vector<8x256xf32>
    %c0_76 = arith.constant 0 : index
    %c0_77 = arith.constant 0 : index
    %c0_78 = arith.constant 0 : index
    %166 = vector.load %arg14[%c0_76, %c0_77, %c0_78] : memref<1x1x256xf32, #tpu.memory_space<vmem>>, vector<1x1x256xf32>
    %167 = vector.shape_cast %166 : vector<1x1x256xf32> to vector<1x256xf32>
    %168 = vector.broadcast %167 : vector<1x256xf32> to vector<8x256xf32>
    %169 = arith.addf %165, %168 : vector<8x256xf32>
    %170 = arith.mulf %169, %169 : vector<8x256xf32>
    %171 = arith.mulf %169, %170 : vector<8x256xf32>
    %cst_79 = arith.constant 4.471500e-02 : f32
    %172 = vector.broadcast %cst_79 : f32 to vector<8x256xf32>
    %173 = arith.mulf %172, %171 : vector<8x256xf32>
    %174 = arith.addf %169, %173 : vector<8x256xf32>
    %cst_80 = arith.constant 0.797884583 : f32
    %175 = vector.broadcast %cst_80 : f32 to vector<8x256xf32>
    %176 = arith.mulf %175, %174 : vector<8x256xf32>
    %177 = math.tanh %176 : vector<8x256xf32>
    %cst_81 = arith.constant 1.000000e+00 : f32
    %178 = vector.broadcast %cst_81 : f32 to vector<8x256xf32>
    %179 = arith.addf %178, %177 : vector<8x256xf32>
    %cst_82 = arith.constant 5.000000e-01 : f32
    %180 = vector.broadcast %cst_82 : f32 to vector<8x256xf32>
    %181 = arith.mulf %180, %179 : vector<8x256xf32>
    %182 = arith.mulf %169, %181 : vector<8x256xf32>
    %183 = arith.truncf %182 : vector<8x256xf32> to vector<8x256xbf16>
    %c0_83 = arith.constant 0 : index
    %c0_84 = arith.constant 0 : index
    %c0_85 = arith.constant 0 : index
    %184 = vector.load %arg15[%c0_83, %c0_84, %c0_85] : memref<1x256x128xbf16, #tpu.memory_space<vmem>>, vector<1x256x128xbf16>
    %185 = vector.shape_cast %184 : vector<1x256x128xbf16> to vector<256x128xbf16>
    %cst_86 = arith.constant dense<0.000000e+00> : vector<8x128xf32>
    %186 = tpu.matmul %183, %185, %cst_86 {dimension_numbers = #tpu.dot_dimension_numbers<[1], [0], [0], [1], [0, 0, 1, 1], [], []>} : vector<8x256xbf16>, vector<256x128xbf16>, vector<8x128xf32> -> vector<8x128xf32>
    %c0_87 = arith.constant 0 : index
    %c0_88 = arith.constant 0 : index
    %c0_89 = arith.constant 0 : index
    %187 = vector.load %arg16[%c0_87, %c0_88, %c0_89] : memref<1x1x128xf32, #tpu.memory_space<vmem>>, vector<1x1x128xf32>
    %188 = vector.shape_cast %187 : vector<1x1x128xf32> to vector<1x128xf32>
    %189 = vector.broadcast %188 : vector<1x128xf32> to vector<8x128xf32>
    %190 = arith.addf %186, %189 : vector<8x128xf32>
    %191 = arith.addf %161, %190 : vector<8x128xf32>
    %c0_90 = arith.constant 0 : index
    %c0_91 = arith.constant 0 : index
    %c0_92 = arith.constant 0 : index
    %192 = vector.load %arg17[%c0_90, %c0_91, %c0_92] : memref<1x1x128xf32, #tpu.memory_space<vmem>>, vector<1x1x128xf32>
    %193 = vector.shape_cast %192 : vector<1x1x128xf32> to vector<1x128xf32>
    %c0_93 = arith.constant 0 : index
    %c0_94 = arith.constant 0 : index
    %c0_95 = arith.constant 0 : index
    %194 = vector.load %arg18[%c0_93, %c0_94, %c0_95] : memref<1x1x128xf32, #tpu.memory_space<vmem>>, vector<1x1x128xf32>
    %195 = vector.shape_cast %194 : vector<1x1x128xf32> to vector<1x128xf32>
    %cst_96 = arith.constant dense<0.000000e+00> : vector<8xf32>
    %196 = vector.multi_reduction <add>, %191, %cst_96 [1] : vector<8x128xf32> to vector<8xf32>
    %197 = vector.shape_cast %196 : vector<8xf32> to vector<8x1xf32>
    %cst_97 = arith.constant 1.280000e+02 : f32
    %198 = vector.broadcast %cst_97 : f32 to vector<8x1xf32>
    %199 = arith.divf %197, %198 : vector<8x1xf32>
    %200 = vector.broadcast %199 : vector<8x1xf32> to vector<8x128xf32>
    %201 = arith.subf %191, %200 : vector<8x128xf32>
    %202 = arith.mulf %201, %201 : vector<8x128xf32>
    %cst_98 = arith.constant dense<0.000000e+00> : vector<8xf32>
    %203 = vector.multi_reduction <add>, %202, %cst_98 [1] : vector<8x128xf32> to vector<8xf32>
    %204 = vector.shape_cast %203 : vector<8xf32> to vector<8x1xf32>
    %cst_99 = arith.constant 1.280000e+02 : f32
    %205 = vector.broadcast %cst_99 : f32 to vector<8x1xf32>
    %206 = arith.divf %204, %205 : vector<8x1xf32>
    %207 = vector.broadcast %199 : vector<8x1xf32> to vector<8x128xf32>
    %208 = arith.subf %191, %207 : vector<8x128xf32>
    %cst_100 = arith.constant 9.99999996E-13 : f32
    %209 = vector.broadcast %cst_100 : f32 to vector<8x1xf32>
    %210 = arith.addf %206, %209 : vector<8x1xf32>
    %211 = math.rsqrt %210 : vector<8x1xf32>
    %212 = vector.broadcast %211 : vector<8x1xf32> to vector<8x128xf32>
    %213 = arith.mulf %208, %212 : vector<8x128xf32>
    %214 = vector.broadcast %193 : vector<1x128xf32> to vector<8x128xf32>
    %215 = arith.mulf %213, %214 : vector<8x128xf32>
    %216 = vector.broadcast %195 : vector<1x128xf32> to vector<8x128xf32>
    %217 = arith.addf %215, %216 : vector<8x128xf32>
    %c0_101 = arith.constant 0 : index
    %c0_102 = arith.constant 0 : index
    %218 = vector.load %arg24[%c0_101, %c0_102] : memref<8x128xf32, #tpu.memory_space<vmem>>, vector<8x128xf32>
    tpu.vector_store %arg24[%c0_101, %c0_102], %217 {strides = array<i32>} : memref<8x128xf32, #tpu.memory_space<vmem>>, vector<8x128xf32>,
    %c1_i32_103 = arith.constant 1 : i32
    %219 = arith.cmpi eq, %arg1, %c1_i32_103 : i32
    %220 = arith.extui %219 : i1 to i32
    %c0_i32_104 = arith.constant 0 : i32
    %221 = arith.cmpi ne, %220, %c0_i32_104 : i32
    scf.if %221 {
      %222 = vector.extract_strided_slice %217 {offsets = [0, 0], sizes = [1, 128], strides = [1, 1]} : vector<8x128xf32> to vector<1x128xf32>
      %223 = arith.truncf %222 : vector<1x128xf32> to vector<1x128xbf16>
      %c0_105 = arith.constant 0 : index
      %c0_106 = arith.constant 0 : index
      %224 = vector.load %arg19[%c0_105, %c0_106] : memref<128x128xbf16, #tpu.memory_space<vmem>>, vector<128x128xbf16>
      %cst_107 = arith.constant dense<0.000000e+00> : vector<1x128xf32>
      %225 = tpu.matmul %223, %224, %cst_107 {dimension_numbers = #tpu.dot_dimension_numbers<[1], [0], [0], [1], [0, 0, 1, 1], [], []>} : vector<1x128xbf16>, vector<128x128xbf16>, vector<1x128xf32> -> vector<1x128xf32>
      %c0_108 = arith.constant 0 : index
      %c0_109 = arith.constant 0 : index
      %226 = vector.load %arg20[%c0_108, %c0_109] : memref<1x128xf32, #tpu.memory_space<vmem>>, vector<1x128xf32>
      %227 = arith.addf %225, %226 : vector<1x128xf32>
      %228 = math.tanh %227 : vector<1x128xf32>
      %229 = arith.truncf %228 : vector<1x128xf32> to vector<1x128xbf16>
      %c0_110 = arith.constant 0 : index
      %c0_111 = arith.constant 0 : index
      %230 = vector.load %arg21[%c0_110, %c0_111] : memref<128x128xbf16, #tpu.memory_space<vmem>>, vector<128x128xbf16>
      %cst_112 = arith.constant dense<0.000000e+00> : vector<1x128xf32>
      %231 = tpu.matmul %229, %230, %cst_112 {dimension_numbers = #tpu.dot_dimension_numbers<[1], [0], [0], [1], [0, 0, 1, 1], [], []>} : vector<1x128xbf16>, vector<128x128xbf16>, vector<1x128xf32> -> vector<1x128xf32>
      %c0_113 = arith.constant 0 : index
      %c0_114 = arith.constant 0 : index
      %232 = vector.load %arg22[%c0_113, %c0_114] : memref<1x128xf32, #tpu.memory_space<vmem>>, vector<1x128xf32>
      %233 = arith.addf %231, %232 : vector<1x128xf32>
      %c0_115 = arith.constant 0 : index
      %c0_116 = arith.constant 0 : index
      %c0_117 = arith.constant 0 : index
      %234 = vector.load %arg23[%c0_115, %c0_116, %c0_117] : memref<1x1x128xf32, #tpu.memory_space<vmem>>, vector<1x1x128xf32>
      %235 = vector.shape_cast %234 : vector<1x1x128xf32> to vector<1x128xf32>
      %236 = vector.shape_cast %233 : vector<1x128xf32> to vector<1x1x128xf32>
      tpu.vector_store %arg23[%c0_115, %c0_116, %c0_117], %236 {strides = array<i32>} : memref<1x1x128xf32, #tpu.memory_space<vmem>>, vector<1x1x128xf32>,
    } else {
    }
    return
  }
  func.func @transform_0(%arg0: i32, %arg1: i32) -> (i32, i32, i32) {
    %c0_i32 = arith.constant 0 : i32
    %c0_i32_0 = arith.constant 0 : i32
    %c0_i32_1 = arith.constant 0 : i32
    return %arg0, %c0_i32, %c0_i32_0 : i32, i32, i32
  }
  func.func @transform_1(%arg0: i32, %arg1: i32) -> (i32, i32, i32) {
    %c0_i32 = arith.constant 0 : i32
    %c0_i32_0 = arith.constant 0 : i32
    %c0_i32_1 = arith.constant 0 : i32
    return %arg0, %c0_i32, %c0_i32_0 : i32, i32, i32
  }
  func.func @transform_2(%arg0: i32, %arg1: i32) -> (i32, i32) {
    %c0_i32 = arith.constant 0 : i32
    %c0_i32_0 = arith.constant 0 : i32
    %c0_i32_1 = arith.constant 0 : i32
    return %c0_i32, %c0_i32_0 : i32, i32
  }
  func.func @transform_3(%arg0: i32, %arg1: i32) -> (i32, i32) {
    %c0_i32 = arith.constant 0 : i32
    %c0_i32_0 = arith.constant 0 : i32
    %c0_i32_1 = arith.constant 0 : i32
    return %c0_i32, %c0_i32_0 : i32, i32
  }
  func.func @transform_4(%arg0: i32, %arg1: i32) -> (i32, i32) {
    %c0_i32 = arith.constant 0 : i32
    %c0_i32_0 = arith.constant 0 : i32
    %c0_i32_1 = arith.constant 0 : i32
    return %c0_i32, %c0_i32_0 : i32, i32
  }
  func.func @transform_5(%arg0: i32, %arg1: i32) -> (i32, i32, i32) {
    %c0_i32 = arith.constant 0 : i32
    %c0_i32_0 = arith.constant 0 : i32
    %c0_i32_1 = arith.constant 0 : i32
    return %arg1, %c0_i32, %c0_i32_0 : i32, i32, i32
  }
  func.func @transform_6(%arg0: i32, %arg1: i32) -> (i32, i32, i32) {
    %c0_i32 = arith.constant 0 : i32
    %c0_i32_0 = arith.constant 0 : i32
    %c0_i32_1 = arith.constant 0 : i32
    return %arg1, %c0_i32, %c0_i32_0 : i32, i32, i32
  }
  func.func @transform_7(%arg0: i32, %arg1: i32) -> (i32, i32, i32) {
    %c0_i32 = arith.constant 0 : i32
    %c0_i32_0 = arith.constant 0 : i32
    %c0_i32_1 = arith.constant 0 : i32
    return %arg1, %c0_i32, %c0_i32_0 : i32, i32, i32
  }
  func.func @transform_8(%arg0: i32, %arg1: i32) -> (i32, i32, i32) {
    %c0_i32 = arith.constant 0 : i32
    %c0_i32_0 = arith.constant 0 : i32
    %c0_i32_1 = arith.constant 0 : i32
    return %arg1, %c0_i32, %c0_i32_0 : i32, i32, i32
  }
  func.func @transform_9(%arg0: i32, %arg1: i32) -> (i32, i32, i32) {
    %c0_i32 = arith.constant 0 : i32
    %c0_i32_0 = arith.constant 0 : i32
    %c0_i32_1 = arith.constant 0 : i32
    return %arg1, %c0_i32, %c0_i32_0 : i32, i32, i32
  }
  func.func @transform_10(%arg0: i32, %arg1: i32) -> (i32, i32, i32) {
    %c0_i32 = arith.constant 0 : i32
    %c0_i32_0 = arith.constant 0 : i32
    %c0_i32_1 = arith.constant 0 : i32
    return %arg1, %c0_i32, %c0_i32_0 : i32, i32, i32
  }
  func.func @transform_11(%arg0: i32, %arg1: i32) -> (i32, i32, i32) {
    %c0_i32 = arith.constant 0 : i32
    %c0_i32_0 = arith.constant 0 : i32
    %c0_i32_1 = arith.constant 0 : i32
    return %arg1, %c0_i32, %c0_i32_0 : i32, i32, i32
  }
  func.func @transform_12(%arg0: i32, %arg1: i32) -> (i32, i32, i32) {
    %c0_i32 = arith.constant 0 : i32
    %c0_i32_0 = arith.constant 0 : i32
    %c0_i32_1 = arith.constant 0 : i32
    return %arg1, %c0_i32, %c0_i32_0 : i32, i32, i32
  }
  func.func @transform_13(%arg0: i32, %arg1: i32) -> (i32, i32, i32) {
    %c0_i32 = arith.constant 0 : i32
    %c0_i32_0 = arith.constant 0 : i32
    %c0_i32_1 = arith.constant 0 : i32
    return %arg1, %c0_i32, %c0_i32_0 : i32, i32, i32
  }
  func.func @transform_14(%arg0: i32, %arg1: i32) -> (i32, i32, i32) {
    %c0_i32 = arith.constant 0 : i32
    %c0_i32_0 = arith.constant 0 : i32
    %c0_i32_1 = arith.constant 0 : i32
    return %arg1, %c0_i32, %c0_i32_0 : i32, i32, i32
  }
  func.func @transform_15(%arg0: i32, %arg1: i32) -> (i32, i32, i32) {
    %c0_i32 = arith.constant 0 : i32
    %c0_i32_0 = arith.constant 0 : i32
    %c0_i32_1 = arith.constant 0 : i32
    return %arg1, %c0_i32, %c0_i32_0 : i32, i32, i32
  }
  func.func @transform_16(%arg0: i32, %arg1: i32) -> (i32, i32, i32) {
    %c0_i32 = arith.constant 0 : i32
    %c0_i32_0 = arith.constant 0 : i32
    %c0_i32_1 = arith.constant 0 : i32
    return %arg1, %c0_i32, %c0_i32_0 : i32, i32, i32
  }
  func.func @transform_17(%arg0: i32, %arg1: i32) -> (i32, i32) {
    %c0_i32 = arith.constant 0 : i32
    %c0_i32_0 = arith.constant 0 : i32
    %c0_i32_1 = arith.constant 0 : i32
    return %c0_i32, %c0_i32_0 : i32, i32
  }
  func.func @transform_18(%arg0: i32, %arg1: i32) -> (i32, i32) {
    %c0_i32 = arith.constant 0 : i32
    %c0_i32_0 = arith.constant 0 : i32
    %c0_i32_1 = arith.constant 0 : i32
    return %c0_i32, %c0_i32_0 : i32, i32
  }
  func.func @transform_19(%arg0: i32, %arg1: i32) -> (i32, i32) {
    %c0_i32 = arith.constant 0 : i32
    %c0_i32_0 = arith.constant 0 : i32
    %c0_i32_1 = arith.constant 0 : i32
    return %c0_i32, %c0_i32_0 : i32, i32
  }
  func.func @transform_20(%arg0: i32, %arg1: i32) -> (i32, i32) {
    %c0_i32 = arith.constant 0 : i32
    %c0_i32_0 = arith.constant 0 : i32
    %c0_i32_1 = arith.constant 0 : i32
    return %c0_i32, %c0_i32_0 : i32, i32
  }
  func.func @transform_21(%arg0: i32, %arg1: i32) -> (i32, i32, i32) {
    %c0_i32 = arith.constant 0 : i32
    %c0_i32_0 = arith.constant 0 : i32
    %c0_i32_1 = arith.constant 0 : i32
    return %arg0, %c0_i32, %c0_i32_0 : i32, i32, i32
  }
}

</mosaic_0001>

<llo_original>
// kernel: tpu_custom_call.1
$region0: #{tpu_custom_call.1}
  #allocation0 [shape = 'u32[]', space=smem, size = 0x4, offset = 0x4, fixed_abs, tag = 'smem constant byte address 0x4 - core index']
  #allocation1 [shape = 'u32[72,128]{1,0:T(1,128)}', space=vmem, size = 0x9000, scoped, tag = 'internal scratch']
  #allocation2 [shape = 'f32[8,128]{1,0:T(8,128)}', space=vmem, size = 0x1000, scoped, tag = 'scratch operand']
  #allocation3 [shape = 'f32[8,128]{1,0:T(8,128)}', space=vmem, size = 0x1000, scoped, tag = 'scratch operand']
  %s0 = inlined_call_operand.hbm [shape: f32[2,8,128], index: 0, kind: input, shape index: {}]
  %s1 = inlined_call_operand.hbm [shape: f32[2,1,8], index: 1, kind: input, shape index: {}]
  %s2 = inlined_call_operand.hbm [shape: f32[4,128], index: 2, kind: input, shape index: {}]
  %s3 = inlined_call_operand.hbm [shape: f32[1,128], index: 3, kind: input, shape index: {}]
  %s4 = inlined_call_operand.hbm [shape: f32[1,128], index: 4, kind: input, shape index: {}]
  %s5 = inlined_call_operand.hbm [shape: bf16[2,128,384], index: 5, kind: input, shape index: {}]
  %s6 = inlined_call_operand.hbm [shape: f32[2,1,384], index: 6, kind: input, shape index: {}]
  %s7 = inlined_call_operand.hbm [shape: bf16[2,128,128], index: 7, kind: input, shape index: {}]
  %s8 = inlined_call_operand.vmem [shape: f32[2,1,128], index: 8, kind: input, shape index: {}]
  %s9 = inlined_call_operand.vmem [shape: f32[2,1,128], index: 9, kind: input, shape index: {}]
  %s10 = inlined_call_operand.hbm [shape: f32[2,1,128], index: 10, kind: input, shape index: {}]
  %s11 = inlined_call_operand.hbm [shape: bf16[2,128,256], index: 11, kind: input, shape index: {}]
  %s12 = inlined_call_operand.vmem [shape: f32[2,1,256], index: 12, kind: input, shape index: {}]
  %s13 = inlined_call_operand.hbm [shape: bf16[2,256,128], index: 13, kind: input, shape index: {}]
  %s14 = inlined_call_operand.vmem [shape: f32[2,1,128], index: 14, kind: input, shape index: {}]
  %s15 = inlined_call_operand.vmem [shape: f32[2,1,128], index: 15, kind: input, shape index: {}]
  %s16 = inlined_call_operand.vmem [shape: f32[2,1,128], index: 16, kind: input, shape index: {}]
  %s17 = inlined_call_operand.hbm [shape: bf16[128,128], index: 17, kind: input, shape index: {}]
  %s18 = inlined_call_operand.vmem [shape: f32[1,128], index: 18, kind: input, shape index: {}]
  %s19 = inlined_call_operand.hbm [shape: bf16[128,128], index: 19, kind: input, shape index: {}]
  %s20 = inlined_call_operand.vmem [shape: f32[1,128], index: 20, kind: input, shape index: {}]
  %s21 = inlined_call_operand.hbm [shape: f32[2,1,128], index: 21, kind: output, shape index: {}]
  %s22 = sld [smem:[#allocation0]]
  $region177: #{tpu_custom_call.1} parent=0
    _
  %s24 = ssub.s32 1, %s22
  %s25 = scalar_select 0, %s24, %s22
  $region1: #{tpu_custom_call.1} parent=0
    #allocation4 [shape = 'u8[8192]{0}', space=vmem, size = 0x2000, scoped, tag = 'input window, operand 0']
    #allocation5 [shape = 's32[2]{0}', space=sflag, size = 0x8, scoped, tag = 'scoped memory for tpu_custom_call.1']
    #allocation6 [shape = 's32[2]{0}', space=sflag, size = 0x8, scoped, tag = 'scoped memory for tpu_custom_call.1']
    #allocation7 [shape = 'u8[1024]{0}', space=vmem, size = 0x400, scoped, tag = 'input window, operand 1']
    #allocation8 [shape = 's32[2]{0}', space=sflag, size = 0x8, scoped, tag = 'scoped memory for tpu_custom_call.1']
    #allocation9 [shape = 'u8[2048]{0}', space=vmem, size = 0x800, scoped, tag = 'input window, operand 2, single buffered']
    #allocation10 [shape = 'u8[512]{0}', space=vmem, size = 0x400, scoped, tag = 'input window, operand 3, single buffered']
    #allocation11 [shape = 's32[1]{0}', space=sflag, size = 0x4, scoped, tag = 'scoped memory for tpu_custom_call.1']
    #allocation12 [shape = 'u8[512]{0}', space=vmem, size = 0x400, scoped, tag = 'input window, operand 4, single buffered']
    #allocation13 [shape = 'u8[196608]{0}', space=vmem, size = 0x30000, scoped, tag = 'input window, operand 5']
    #allocation14 [shape = 's32[2]{0}', space=sflag, size = 0x8, scoped, tag = 'scoped memory for tpu_custom_call.1']
    #allocation15 [shape = 'u8[3072]{0}', space=vmem, size = 0xc00, scoped, tag = 'input window, operand 6']
    #allocation16 [shape = 'u8[65536]{0}', space=vmem, size = 0x10000, scoped, tag = 'input window, operand 7']
    #allocation17 [shape = 's32[2]{0}', space=sflag, size = 0x8, scoped, tag = 'scoped memory for tpu_custom_call.1']
    #allocation18 [shape = 'u8[1024]{0}', space=vmem, size = 0x400, scoped, tag = 'input window, operand 10']
    #allocation19 [shape = 'u8[131072]{0}', space=vmem, size = 0x20000, scoped, tag = 'input window, operand 11']
    #allocation20 [shape = 's32[2]{0}', space=sflag, size = 0x8, scoped, tag = 'scoped memory for tpu_custom_call.1']
    #allocation21 [shape = 'u8[131072]{0}', space=vmem, size = 0x20000, scoped, tag = 'input window, operand 13']
    #allocation22 [shape = 'u8[32768]{0}', space=vmem, size = 0x8000, scoped, tag = 'input window, operand 17, single buffered']
    #allocation23 [shape = 's32[1]{0}', space=sflag, size = 0x4, scoped, tag = 'scoped memory for tpu_custom_call.1']
    #allocation24 [shape = 'u8[32768]{0}', space=vmem, size = 0x8000, scoped, tag = 'input window, operand 19, single buffered']
    #allocation25 [shape = 'u8[1024]{0}', space=vmem, size = 0x400, scoped, tag = 'output window, operand 0']
    %26 = vsyncpa [#allocation5], 0
    %s27 = scalar_lea.sflag [#allocation5], 1
    %28 = vsyncpa %s27, 0
    %29 = vsyncpa [#allocation8], 0
    %s30 = scalar_lea.sflag [#allocation8], 1
    %31 = vsyncpa %s30, 0
    %32 = vsyncpa [#allocation11], 0
    %33 = vsyncpa [#allocation14], 0
    %s34 = scalar_lea.sflag [#allocation14], 1
    %35 = vsyncpa %s34, 0
    %36 = vsyncpa [#allocation17], 0
    %s37 = scalar_lea.sflag [#allocation17], 1
    %38 = vsyncpa %s37, 0
    %39 = vsyncpa [#allocation20], 0
    %s40 = scalar_lea.sflag [#allocation20], 1
    %41 = vsyncpa %s40, 0
    %42 = vsyncpa [#allocation23], 0
    %43 = vsyncpa [#allocation6], 0
    %s44 = scalar_lea.sflag [#allocation6], 1
    %45 = vsyncpa %s44, 0
    loop: start=0, step=1, limit=6
    $region2: #{tpu_custom_call.1} parent=1 // loop_pre_header
      _
    $region3: #{tpu_custom_call.1} parent=1 // loop_header
      %s47 = sphi 0, %s51
      %p48 = scmp.ge.s32.totalorder %s47, 6
      %s54 = sphi 0, %s66
      %s55 = sphi 0, %s62
      %s56 = sphi 0, %s54
      %s57 = sphi 0, %s55
      %s58 = sphi 0, %s56
      %s59 = sphi 0, %s57
      %s69 = sphi 0, %s71
      %s72 = sphi 0, %s69
      %s73 = sphi 0, %s72
      %s89 = sphi 0, %s73
      %s95 = sphi 0, %s97
      %s98 = sphi 0, %s95
      %s99 = sphi 0, %s98
      %s115 = sphi 0, %s99
      %s119 = sphi 0, %s119
      %s121 = sphi 0, %s119
      %s122 = sphi 0, %s121
      %s136 = sphi 0, %s122
      %s140 = sphi 0, %s140
      %s142 = sphi 0, %s140
      %s143 = sphi 0, %s142
      %s157 = sphi 0, %s143
      %s161 = sphi 0, %s161
      %s163 = sphi 0, %s161
      %s164 = sphi 0, %s163
      %s178 = sphi 0, %s164
      %s184 = sphi 0, %s186
      %s187 = sphi 0, %s184
      %s188 = sphi 0, %s187
      %s204 = sphi 0, %s188
      %s210 = sphi 0, %s212
      %s213 = sphi 0, %s210
      %s214 = sphi 0, %s213
      %s230 = sphi 0, %s214
      %s236 = sphi 0, %s238
      %s239 = sphi 0, %s236
      %s240 = sphi 0, %s239
      %s256 = sphi 0, %s240
      %s262 = sphi 0, %s264
      %s265 = sphi 0, %s262
      %s266 = sphi 0, %s265
      %s282 = sphi 0, %s266
      %s288 = sphi 0, %s290
      %s291 = sphi 0, %s288
      %s292 = sphi 0, %s291
      %s308 = sphi 0, %s292
      %s314 = sphi 0, %s316
      %s317 = sphi 0, %s314
      %s318 = sphi 0, %s317
      %s334 = sphi 0, %s318
      %s340 = sphi 0, %s342
      %s343 = sphi 0, %s340
      %s344 = sphi 0, %s343
      %s360 = sphi 0, %s344
      %s366 = sphi 0, %s368
      %s369 = sphi 0, %s366
      %s370 = sphi 0, %s369
      %s386 = sphi 0, %s370
      %s392 = sphi 0, %s394
      %s395 = sphi 0, %s392
      %s396 = sphi 0, %s395
      %s412 = sphi 0, %s396
      %s418 = sphi 0, %s420
      %s421 = sphi 0, %s418
      %s422 = sphi 0, %s421
      %s438 = sphi 0, %s422
      %s444 = sphi 0, %s446
      %s447 = sphi 0, %s444
      %s448 = sphi 0, %s447
      %s464 = sphi 0, %s448
      %s470 = sphi 0, %s472
      %s473 = sphi 0, %s470
      %s474 = sphi 0, %s473
      %s490 = sphi 0, %s474
      %s494 = sphi 0, %s494
      %s496 = sphi 0, %s494
      %s497 = sphi 0, %s496
      %s511 = sphi 0, %s497
      %s515 = sphi 0, %s515
      %s517 = sphi 0, %s515
      %s518 = sphi 0, %s517
      %s532 = sphi 0, %s518
      %s536 = sphi 0, %s536
      %s538 = sphi 0, %s536
      %s539 = sphi 0, %s538
      %s553 = sphi 0, %s539
      %s557 = sphi 0, %s557
      %s559 = sphi 0, %s557
      %s560 = sphi 0, %s559
      %s574 = sphi 0, %s560
      %s580 = sphi 0, %s582
      %s583 = sphi 0, %s580
      %s584 = sphi 0, %s583
      %s600 = sphi 0, %s584
    $region4: #{tpu_custom_call.1} parent=1 // loop_header_branch
      %50 = sbr.rel (%p48) target = $region8
    $region5: #{tpu_custom_call.1} parent=1 // loop_body
      %s52 = ssub.s32 %s47, 1
      %s53 = ssub.s32 %s47, 2
      %s60 = sadd.s32 1, %s55
      %p61 = scmp.ge.s32.totalorder %s60, 2
      %s62 = scalar_select %p61, 0, %s60
      %s63 = sadd.s32 1, %s54
      %s64 = scalar_select %p61, %s63, %s54
      %p65 = scmp.ge.s32.totalorder %s64, 2
      %s66 = scalar_select %p65, 0, %s64
      %s67 = ssub.s32 %s54, %s66
      %p68 = scmp.eq.s32.totalorder %s67, 0
      %s70 = sadd.s32 %s69, 1
      %s71 = scalar_select %p68, %s69, %s70
      %p74 = pneg %p68
      %p75 = scmp.eq.s32.totalorder %s47, 3
      %p76 = por %p74, %p75
      %p77 = scmp.ne.s32.totalorder %s69, %s72
      %p78 = scmp.eq.s32.totalorder %s47, 0
      %p79 = por %p77, %p78
      %p80 = scmp.ne.s32.totalorder %s69, %s72
      %p81 = scmp.eq.s32.totalorder %s52, 3
      %p82 = por %p80, %p81
      %p83 = scmp.ne.s32.totalorder %s72, %s73
      %p84 = scmp.eq.s32.totalorder %s52, 0
      %p85 = por %p83, %p84
      %p86 = scmp.ne.s32.totalorder %s72, %s73
      %p87 = scmp.eq.s32.totalorder %s53, 3
      %p88 = por %p86, %p87
      %p90 = scmp.ne.s32.totalorder %s73, %s89
      %p91 = scmp.eq.s32.totalorder %s53, 0
      %p92 = por %p90, %p91
      %s93 = ssub.s32 %s54, %s66
      %p94 = scmp.eq.s32.totalorder %s93, 0
      %s96 = sadd.s32 %s95, 1
      %s97 = scalar_select %p94, %s95, %s96
      %p100 = pneg %p94
      %p101 = scmp.eq.s32.totalorder %s47, 3
      %p102 = por %p100, %p101
      %p103 = scmp.ne.s32.totalorder %s95, %s98
      %p104 = scmp.eq.s32.totalorder %s47, 0
      %p105 = por %p103, %p104
      %p106 = scmp.ne.s32.totalorder %s95, %s98
      %p107 = scmp.eq.s32.totalorder %s52, 3
      %p108 = por %p106, %p107
      %p109 = scmp.ne.s32.totalorder %s98, %s99
      %p110 = scmp.eq.s32.totalorder %s52, 0
      %p111 = por %p109, %p110
      %p112 = scmp.ne.s32.totalorder %s98, %s99
      %p113 = scmp.eq.s32.totalorder %s53, 3
      %p114 = por %p112, %p113
      %p116 = scmp.ne.s32.totalorder %s99, %s115
      %p117 = scmp.eq.s32.totalorder %s53, 0
      %p118 = por %p116, %p117
      %s120 = sadd.s32 %s119, 1
      %p123 = scmp.eq.s32.totalorder %s47, 3
      %p124 = scmp.ne.s32.totalorder %s119, %s121
      %p125 = scmp.eq.s32.totalorder %s47, 0
      %p126 = por %p124, %p125
      %p127 = scmp.ne.s32.totalorder %s119, %s121
      %p128 = scmp.eq.s32.totalorder %s52, 3
      %p129 = por %p127, %p128
      %p130 = scmp.ne.s32.totalorder %s121, %s122
      %p131 = scmp.eq.s32.totalorder %s52, 0
      %p132 = por %p130, %p131
      %p133 = scmp.ne.s32.totalorder %s121, %s122
      %p134 = scmp.eq.s32.totalorder %s53, 3
      %p135 = por %p133, %p134
      %p137 = scmp.ne.s32.totalorder %s122, %s136
      %p138 = scmp.eq.s32.totalorder %s53, 0
      %p139 = por %p137, %p138
      %s141 = sadd.s32 %s140, 1
      %p144 = scmp.eq.s32.totalorder %s47, 3
      %p145 = scmp.ne.s32.totalorder %s140, %s142
      %p146 = scmp.eq.s32.totalorder %s47, 0
      %p147 = por %p145, %p146
      %p148 = scmp.ne.s32.totalorder %s140, %s142
      %p149 = scmp.eq.s32.totalorder %s52, 3
      %p150 = por %p148, %p149
      %p151 = scmp.ne.s32.totalorder %s142, %s143
      %p152 = scmp.eq.s32.totalorder %s52, 0
      %p153 = por %p151, %p152
      %p154 = scmp.ne.s32.totalorder %s142, %s143
      %p155 = scmp.eq.s32.totalorder %s53, 3
      %p156 = por %p154, %p155
      %p158 = scmp.ne.s32.totalorder %s143, %s157
      %p159 = scmp.eq.s32.totalorder %s53, 0
      %p160 = por %p158, %p159
      %s162 = sadd.s32 %s161, 1
      %p165 = scmp.eq.s32.totalorder %s47, 3
      %p166 = scmp.ne.s32.totalorder %s161, %s163
      %p167 = scmp.eq.s32.totalorder %s47, 0
      %p168 = por %p166, %p167
      %p169 = scmp.ne.s32.totalorder %s161, %s163
      %p170 = scmp.eq.s32.totalorder %s52, 3
      %p171 = por %p169, %p170
      %p172 = scmp.ne.s32.totalorder %s163, %s164
      %p173 = scmp.eq.s32.totalorder %s52, 0
      %p174 = por %p172, %p173
      %p175 = scmp.ne.s32.totalorder %s163, %s164
      %p176 = scmp.eq.s32.totalorder %s53, 3
      %p177 = por %p175, %p176
      %p179 = scmp.ne.s32.totalorder %s164, %s178
      %p180 = scmp.eq.s32.totalorder %s53, 0
      %p181 = por %p179, %p180
      %s182 = ssub.s32 %s55, %s62
      %p183 = scmp.eq.s32.totalorder %s182, 0
      %s185 = sadd.s32 %s184, 1
      %s186 = scalar_select %p183, %s184, %s185
      %p189 = pneg %p183
      %p190 = scmp.eq.s32.totalorder %s47, 3
      %p191 = por %p189, %p190
      %p192 = scmp.ne.s32.totalorder %s184, %s187
      %p193 = scmp.eq.s32.totalorder %s47, 0
      %p194 = por %p192, %p193
      %p195 = scmp.ne.s32.totalorder %s184, %s187
      %p196 = scmp.eq.s32.totalorder %s52, 3
      %p197 = por %p195, %p196
      %p198 = scmp.ne.s32.totalorder %s187, %s188
      %p199 = scmp.eq.s32.totalorder %s52, 0
      %p200 = por %p198, %p199
      %p201 = scmp.ne.s32.totalorder %s187, %s188
      %p202 = scmp.eq.s32.totalorder %s53, 3
      %p203 = por %p201, %p202
      %p205 = scmp.ne.s32.totalorder %s188, %s204
      %p206 = scmp.eq.s32.totalorder %s53, 0
      %p207 = por %p205, %p206
      %s208 = ssub.s32 %s55, %s62
      %p209 = scmp.eq.s32.totalorder %s208, 0
      %s211 = sadd.s32 %s210, 1
      %s212 = scalar_select %p209, %s210, %s211
      %p215 = pneg %p209
      %p216 = scmp.eq.s32.totalorder %s47, 3
      %p217 = por %p215, %p216
      %p218 = scmp.ne.s32.totalorder %s210, %s213
      %p219 = scmp.eq.s32.totalorder %s47, 0
      %p220 = por %p218, %p219
      %p221 = scmp.ne.s32.totalorder %s210, %s213
      %p222 = scmp.eq.s32.totalorder %s52, 3
      %p223 = por %p221, %p222
      %p224 = scmp.ne.s32.totalorder %s213, %s214
      %p225 = scmp.eq.s32.totalorder %s52, 0
      %p226 = por %p224, %p225
      %p227 = scmp.ne.s32.totalorder %s213, %s214
      %p228 = scmp.eq.s32.totalorder %s53, 3
      %p229 = por %p227, %p228
      %p231 = scmp.ne.s32.totalorder %s214, %s230
      %p232 = scmp.eq.s32.totalorder %s53, 0
      %p233 = por %p231, %p232
      %s234 = ssub.s32 %s55, %s62
      %p235 = scmp.eq.s32.totalorder %s234, 0
      %s237 = sadd.s32 %s236, 1
      %s238 = scalar_select %p235, %s236, %s237
      %p241 = pneg %p235
      %p242 = scmp.eq.s32.totalorder %s47, 3
      %p243 = por %p241, %p242
      %p244 = scmp.ne.s32.totalorder %s236, %s239
      %p245 = scmp.eq.s32.totalorder %s47, 0
      %p246 = por %p244, %p245
      %p247 = scmp.ne.s32.totalorder %s236, %s239
      %p248 = scmp.eq.s32.totalorder %s52, 3
      %p249 = por %p247, %p248
      %p250 = scmp.ne.s32.totalorder %s239, %s240
      %p251 = scmp.eq.s32.totalorder %s52, 0
      %p252 = por %p250, %p251
      %p253 = scmp.ne.s32.totalorder %s239, %s240
      %p254 = scmp.eq.s32.totalorder %s53, 3
      %p255 = por %p253, %p254
      %p257 = scmp.ne.s32.totalorder %s240, %s256
      %p258 = scmp.eq.s32.totalorder %s53, 0
      %p259 = por %p257, %p258
      %s260 = ssub.s32 %s55, %s62
      %p261 = scmp.eq.s32.totalorder %s260, 0
      %s263 = sadd.s32 %s262, 1
      %s264 = scalar_select %p261, %s262, %s263
      %p267 = pneg %p261
      %p268 = scmp.eq.s32.totalorder %s47, 3
      %p269 = por %p267, %p268
      %p270 = scmp.ne.s32.totalorder %s262, %s265
      %p271 = scmp.eq.s32.totalorder %s47, 0
      %p272 = por %p270, %p271
      %p273 = scmp.ne.s32.totalorder %s262, %s265
      %p274 = scmp.eq.s32.totalorder %s52, 3
      %p275 = por %p273, %p274
      %p276 = scmp.ne.s32.totalorder %s265, %s266
      %p277 = scmp.eq.s32.totalorder %s52, 0
      %p278 = por %p276, %p277
      %p279 = scmp.ne.s32.totalorder %s265, %s266
      %p280 = scmp.eq.s32.totalorder %s53, 3
      %p281 = por %p279, %p280
      %p283 = scmp.ne.s32.totalorder %s266, %s282
      %p284 = scmp.eq.s32.totalorder %s53, 0
      %p285 = por %p283, %p284
      %s286 = ssub.s32 %s55, %s62
      %p287 = scmp.eq.s32.totalorder %s286, 0
      %s289 = sadd.s32 %s288, 1
      %s290 = scalar_select %p287, %s288, %s289
      %p293 = pneg %p287
      %p294 = scmp.eq.s32.totalorder %s47, 3
      %p295 = por %p293, %p294
      %p296 = scmp.ne.s32.totalorder %s288, %s291
      %p297 = scmp.eq.s32.totalorder %s47, 0
      %p298 = por %p296, %p297
      %p299 = scmp.ne.s32.totalorder %s288, %s291
      %p300 = scmp.eq.s32.totalorder %s52, 3
      %p301 = por %p299, %p300
      %p302 = scmp.ne.s32.totalorder %s291, %s292
      %p303 = scmp.eq.s32.totalorder %s52, 0
      %p304 = por %p302, %p303
      %p305 = scmp.ne.s32.totalorder %s291, %s292
      %p306 = scmp.eq.s32.totalorder %s53, 3
      %p307 = por %p305, %p306
      %p309 = scmp.ne.s32.totalorder %s292, %s308
      %p310 = scmp.eq.s32.totalorder %s53, 0
      %p311 = por %p309, %p310
      %s312 = ssub.s32 %s55, %s62
      %p313 = scmp.eq.s32.totalorder %s312, 0
      %s315 = sadd.s32 %s314, 1
      %s316 = scalar_select %p313, %s314, %s315
      %p319 = pneg %p313
      %p320 = scmp.eq.s32.totalorder %s47, 3
      %p321 = por %p319, %p320
      %p322 = scmp.ne.s32.totalorder %s314, %s317
      %p323 = scmp.eq.s32.totalorder %s47, 0
      %p324 = por %p322, %p323
      %p325 = scmp.ne.s32.totalorder %s314, %s317
      %p326 = scmp.eq.s32.totalorder %s52, 3
      %p327 = por %p325, %p326
      %p328 = scmp.ne.s32.totalorder %s317, %s318
      %p329 = scmp.eq.s32.totalorder %s52, 0
      %p330 = por %p328, %p329
      %p331 = scmp.ne.s32.totalorder %s317, %s318
      %p332 = scmp.eq.s32.totalorder %s53, 3
      %p333 = por %p331, %p332
      %p335 = scmp.ne.s32.totalorder %s318, %s334
      %p336 = scmp.eq.s32.totalorder %s53, 0
      %p337 = por %p335, %p336
      %s338 = ssub.s32 %s55, %s62
      %p339 = scmp.eq.s32.totalorder %s338, 0
      %s341 = sadd.s32 %s340, 1
      %s342 = scalar_select %p339, %s340, %s341
      %p345 = pneg %p339
      %p346 = scmp.eq.s32.totalorder %s47, 3
      %p347 = por %p345, %p346
      %p348 = scmp.ne.s32.totalorder %s340, %s343
      %p349 = scmp.eq.s32.totalorder %s47, 0
      %p350 = por %p348, %p349
      %p351 = scmp.ne.s32.totalorder %s340, %s343
      %p352 = scmp.eq.s32.totalorder %s52, 3
      %p353 = por %p351, %p352
      %p354 = scmp.ne.s32.totalorder %s343, %s344
      %p355 = scmp.eq.s32.totalorder %s52, 0
      %p356 = por %p354, %p355
      %p357 = scmp.ne.s32.totalorder %s343, %s344
      %p358 = scmp.eq.s32.totalorder %s53, 3
      %p359 = por %p357, %p358
      %p361 = scmp.ne.s32.totalorder %s344, %s360
      %p362 = scmp.eq.s32.totalorder %s53, 0
      %p363 = por %p361, %p362
      %s364 = ssub.s32 %s55, %s62
      %p365 = scmp.eq.s32.totalorder %s364, 0
      %s367 = sadd.s32 %s366, 1
      %s368 = scalar_select %p365, %s366, %s367
      %p371 = pneg %p365
      %p372 = scmp.eq.s32.totalorder %s47, 3
      %p373 = por %p371, %p372
      %p374 = scmp.ne.s32.totalorder %s366, %s369
      %p375 = scmp.eq.s32.totalorder %s47, 0
      %p376 = por %p374, %p375
      %p377 = scmp.ne.s32.totalorder %s366, %s369
      %p378 = scmp.eq.s32.totalorder %s52, 3
      %p379 = por %p377, %p378
      %p380 = scmp.ne.s32.totalorder %s369, %s370
      %p381 = scmp.eq.s32.totalorder %s52, 0
      %p382 = por %p380, %p381
      %p383 = scmp.ne.s32.totalorder %s369, %s370
      %p384 = scmp.eq.s32.totalorder %s53, 3
      %p385 = por %p383, %p384
      %p387 = scmp.ne.s32.totalorder %s370, %s386
      %p388 = scmp.eq.s32.totalorder %s53, 0
      %p389 = por %p387, %p388
      %s390 = ssub.s32 %s55, %s62
      %p391 = scmp.eq.s32.totalorder %s390, 0
      %s393 = sadd.s32 %s392, 1
      %s394 = scalar_select %p391, %s392, %s393
      %p397 = pneg %p391
      %p398 = scmp.eq.s32.totalorder %s47, 3
      %p399 = por %p397, %p398
      %p400 = scmp.ne.s32.totalorder %s392, %s395
      %p401 = scmp.eq.s32.totalorder %s47, 0
      %p402 = por %p400, %p401
      %p403 = scmp.ne.s32.totalorder %s392, %s395
      %p404 = scmp.eq.s32.totalorder %s52, 3
      %p405 = por %p403, %p404
      %p406 = scmp.ne.s32.totalorder %s395, %s396
      %p407 = scmp.eq.s32.totalorder %s52, 0
      %p408 = por %p406, %p407
      %p409 = scmp.ne.s32.totalorder %s395, %s396
      %p410 = scmp.eq.s32.totalorder %s53, 3
      %p411 = por %p409, %p410
      %p413 = scmp.ne.s32.totalorder %s396, %s412
      %p414 = scmp.eq.s32.totalorder %s53, 0
      %p415 = por %p413, %p414
      %s416 = ssub.s32 %s55, %s62
      %p417 = scmp.eq.s32.totalorder %s416, 0
      %s419 = sadd.s32 %s418, 1
      %s420 = scalar_select %p417, %s418, %s419
      %p423 = pneg %p417
      %p424 = scmp.eq.s32.totalorder %s47, 3
      %p425 = por %p423, %p424
      %p426 = scmp.ne.s32.totalorder %s418, %s421
      %p427 = scmp.eq.s32.totalorder %s47, 0
      %p428 = por %p426, %p427
      %p429 = scmp.ne.s32.totalorder %s418, %s421
      %p430 = scmp.eq.s32.totalorder %s52, 3
      %p431 = por %p429, %p430
      %p432 = scmp.ne.s32.totalorder %s421, %s422
      %p433 = scmp.eq.s32.totalorder %s52, 0
      %p434 = por %p432, %p433
      %p435 = scmp.ne.s32.totalorder %s421, %s422
      %p436 = scmp.eq.s32.totalorder %s53, 3
      %p437 = por %p435, %p436
      %p439 = scmp.ne.s32.totalorder %s422, %s438
      %p440 = scmp.eq.s32.totalorder %s53, 0
      %p441 = por %p439, %p440
      %s442 = ssub.s32 %s55, %s62
      %p443 = scmp.eq.s32.totalorder %s442, 0
      %s445 = sadd.s32 %s444, 1
      %s446 = scalar_select %p443, %s444, %s445
      %p449 = pneg %p443
      %p450 = scmp.eq.s32.totalorder %s47, 3
      %p451 = por %p449, %p450
      %p452 = scmp.ne.s32.totalorder %s444, %s447
      %p453 = scmp.eq.s32.totalorder %s47, 0
      %p454 = por %p452, %p453
      %p455 = scmp.ne.s32.totalorder %s444, %s447
      %p456 = scmp.eq.s32.totalorder %s52, 3
      %p457 = por %p455, %p456
      %p458 = scmp.ne.s32.totalorder %s447, %s448
      %p459 = scmp.eq.s32.totalorder %s52, 0
      %p460 = por %p458, %p459
      %p461 = scmp.ne.s32.totalorder %s447, %s448
      %p462 = scmp.eq.s32.totalorder %s53, 3
      %p463 = por %p461, %p462
      %p465 = scmp.ne.s32.totalorder %s448, %s464
      %p466 = scmp.eq.s32.totalorder %s53, 0
      %p467 = por %p465, %p466
      %s468 = ssub.s32 %s55, %s62
      %p469 = scmp.eq.s32.totalorder %s468, 0
      %s471 = sadd.s32 %s470, 1
      %s472 = scalar_select %p469, %s470, %s471
      %p475 = pneg %p469
      %p476 = scmp.eq.s32.totalorder %s47, 3
      %p477 = por %p475, %p476
      %p478 = scmp.ne.s32.totalorder %s470, %s473
      %p479 = scmp.eq.s32.totalorder %s47, 0
      %p480 = por %p478, %p479
      %p481 = scmp.ne.s32.totalorder %s470, %s473
      %p482 = scmp.eq.s32.totalorder %s52, 3
      %p483 = por %p481, %p482
      %p484 = scmp.ne.s32.totalorder %s473, %s474
      %p485 = scmp.eq.s32.totalorder %s52, 0
      %p486 = por %p484, %p485
      %p487 = scmp.ne.s32.totalorder %s473, %s474
      %p488 = scmp.eq.s32.totalorder %s53, 3
      %p489 = por %p487, %p488
      %p491 = scmp.ne.s32.totalorder %s474, %s490
      %p492 = scmp.eq.s32.totalorder %s53, 0
      %p493 = por %p491, %p492
      %s495 = sadd.s32 %s494, 1
      %p498 = scmp.eq.s32.totalorder %s47, 3
      %p499 = scmp.ne.s32.totalorder %s494, %s496
      %p500 = scmp.eq.s32.totalorder %s47, 0
      %p501 = por %p499, %p500
      %p502 = scmp.ne.s32.totalorder %s494, %s496
      %p503 = scmp.eq.s32.totalorder %s52, 3
      %p504 = por %p502, %p503
      %p505 = scmp.ne.s32.totalorder %s496, %s497
      %p506 = scmp.eq.s32.totalorder %s52, 0
      %p507 = por %p505, %p506
      %p508 = scmp.ne.s32.totalorder %s496, %s497
      %p509 = scmp.eq.s32.totalorder %s53, 3
      %p510 = por %p508, %p509
      %p512 = scmp.ne.s32.totalorder %s497, %s511
      %p513 = scmp.eq.s32.totalorder %s53, 0
      %p514 = por %p512, %p513
      %s516 = sadd.s32 %s515, 1
      %p519 = scmp.eq.s32.totalorder %s47, 3
      %p520 = scmp.ne.s32.totalorder %s515, %s517
      %p521 = scmp.eq.s32.totalorder %s47, 0
      %p522 = por %p520, %p521
      %p523 = scmp.ne.s32.totalorder %s515, %s517
      %p524 = scmp.eq.s32.totalorder %s52, 3
      %p525 = por %p523, %p524
      %p526 = scmp.ne.s32.totalorder %s517, %s518
      %p527 = scmp.eq.s32.totalorder %s52, 0
      %p528 = por %p526, %p527
      %p529 = scmp.ne.s32.totalorder %s517, %s518
      %p530 = scmp.eq.s32.totalorder %s53, 3
      %p531 = por %p529, %p530
      %p533 = scmp.ne.s32.totalorder %s518, %s532
      %p534 = scmp.eq.s32.totalorder %s53, 0
      %p535 = por %p533, %p534
      %s537 = sadd.s32 %s536, 1
      %p540 = scmp.eq.s32.totalorder %s47, 3
      %p541 = scmp.ne.s32.totalorder %s536, %s538
      %p542 = scmp.eq.s32.totalorder %s47, 0
      %p543 = por %p541, %p542
      %p544 = scmp.ne.s32.totalorder %s536, %s538
      %p545 = scmp.eq.s32.totalorder %s52, 3
      %p546 = por %p544, %p545
      %p547 = scmp.ne.s32.totalorder %s538, %s539
      %p548 = scmp.eq.s32.totalorder %s52, 0
      %p549 = por %p547, %p548
      %p550 = scmp.ne.s32.totalorder %s538, %s539
      %p551 = scmp.eq.s32.totalorder %s53, 3
      %p552 = por %p550, %p551
      %p554 = scmp.ne.s32.totalorder %s539, %s553
      %p555 = scmp.eq.s32.totalorder %s53, 0
      %p556 = por %p554, %p555
      %s558 = sadd.s32 %s557, 1
      %p561 = scmp.eq.s32.totalorder %s47, 3
      %p562 = scmp.ne.s32.totalorder %s557, %s559
      %p563 = scmp.eq.s32.totalorder %s47, 0
      %p564 = por %p562, %p563
      %p565 = scmp.ne.s32.totalorder %s557, %s559
      %p566 = scmp.eq.s32.totalorder %s52, 3
      %p567 = por %p565, %p566
      %p568 = scmp.ne.s32.totalorder %s559, %s560
      %p569 = scmp.eq.s32.totalorder %s52, 0
      %p570 = por %p568, %p569
      %p571 = scmp.ne.s32.totalorder %s559, %s560
      %p572 = scmp.eq.s32.totalorder %s53, 3
      %p573 = por %p571, %p572
      %p575 = scmp.ne.s32.totalorder %s560, %s574
      %p576 = scmp.eq.s32.totalorder %s53, 0
      %p577 = por %p575, %p576
      %s578 = ssub.s32 %s54, %s66
      %p579 = scmp.eq.s32.totalorder %s578, 0
      %s581 = sadd.s32 %s580, 1
      %s582 = scalar_select %p579, %s580, %s581
      %p585 = pneg %p579
      %p586 = scmp.eq.s32.totalorder %s47, 3
      %p587 = por %p585, %p586
      %p588 = scmp.ne.s32.totalorder %s580, %s583
      %p589 = scmp.eq.s32.totalorder %s47, 0
      %p590 = por %p588, %p589
      %p591 = scmp.ne.s32.totalorder %s580, %s583
      %p592 = scmp.eq.s32.totalorder %s52, 3
      %p593 = por %p591, %p592
      %p594 = scmp.ne.s32.totalorder %s583, %s584
      %p595 = scmp.eq.s32.totalorder %s52, 0
      %p596 = por %p594, %p595
      %p597 = scmp.ne.s32.totalorder %s583, %s584
      %p598 = scmp.eq.s32.totalorder %s53, 3
      %p599 = por %p597, %p598
      %p601 = scmp.ne.s32.totalorder %s584, %s600
      %p602 = scmp.eq.s32.totalorder %s53, 0
      %p603 = por %p601, %p602
      %p604 = scmp.le.s32.totalorder 1, %s47
      %p605 = scmp.lt.s32.totalorder %s47, 5
      %p606 = pnand %p604, %p605
      %p607 = pneg %p606
      // Predicated region
      $region9: #{tpu_custom_call.1} parent=5 // pred_check
        _
      $region10: #{tpu_custom_call.1} parent=5 // pred_check_branch
        %609 = sbr.rel (%p606) target = $region12
      $region11: #{tpu_custom_call.1} parent=5 // pred_region
        %s610 = ssub.s32 %s47, 1
        // Predicated region
        $region13: #{tpu_custom_call.1} parent=11 // pred_check
          %p611 = pneg %p132
        $region14: #{tpu_custom_call.1} parent=11 // pred_check_branch
          %613 = sbr.rel (%p611) target = $region16
        $region15: #{tpu_custom_call.1} parent=11 // pred_region
          %615 = vsyncadd [#allocation8], 0
          %s617 = sshll.u32 %s2, 4
          %s618 = int_to_ptr.hbm [resolvable:$true] %s617
          %s619 = sshll.u32 [#allocation9], 4
          %s620 = int_to_ptr.vmem [resolvable:$true] %s619
          %622 = dma.hbm_to_vmem [thread:$0]  %s618, 64, %s620, [#allocation8]
        $region16: #{tpu_custom_call.1} parent=11 // pred_fallthru
          _
        // Predicated region
        $region17: #{tpu_custom_call.1} parent=11 // pred_check
          %p623 = pneg %p153
        $region18: #{tpu_custom_call.1} parent=11 // pred_check_branch
          %625 = sbr.rel (%p623) target = $region20
        $region19: #{tpu_custom_call.1} parent=11 // pred_region
          %627 = vsyncadd [#allocation11], 0
          %s629 = sshll.u32 %s3, 4
          %s630 = int_to_ptr.hbm [resolvable:$true] %s629
          %s631 = sshll.u32 [#allocation10], 4
          %s632 = int_to_ptr.vmem [resolvable:$true] %s631
          %634 = dma.hbm_to_vmem [thread:$0]  %s630, 16, %s632, [#allocation11]
        $region20: #{tpu_custom_call.1} parent=11 // pred_fallthru
          _
        // Predicated region
        $region21: #{tpu_custom_call.1} parent=11 // pred_check
          %p635 = pneg %p174
        $region22: #{tpu_custom_call.1} parent=11 // pred_check_branch
          %637 = sbr.rel (%p635) target = $region24
        $region23: #{tpu_custom_call.1} parent=11 // pred_region
          %639 = vsyncadd [#allocation11], 0
          %s641 = sshll.u32 %s4, 4
          %s642 = int_to_ptr.hbm [resolvable:$true] %s641
          %s643 = sshll.u32 [#allocation12], 4
          %s644 = int_to_ptr.vmem [resolvable:$true] %s643
          %646 = dma.hbm_to_vmem [thread:$0]  %s642, 16, %s644, [#allocation11]
        $region24: #{tpu_custom_call.1} parent=11 // pred_fallthru
          _
        // Predicated region
        $region25: #{tpu_custom_call.1} parent=11 // pred_check
          %p647 = pneg %p507
        $region26: #{tpu_custom_call.1} parent=11 // pred_check_branch
          %649 = sbr.rel (%p647) target = $region28
        $region27: #{tpu_custom_call.1} parent=11 // pred_region
          %651 = vsyncadd [#allocation23], 0
          %s652 = sshll.u32 %s17, 4
          %s653 = int_to_ptr.hbm [resolvable:$true] %s652
          %s654 = sshll.u32 [#allocation22], 4
          %s655 = int_to_ptr.vmem [resolvable:$true] %s654
          %660 = dma.hbm_to_vmem [thread:$0]  %s653, 1024, %s655, [#allocation23], 64, 64, 4
        $region28: #{tpu_custom_call.1} parent=11 // pred_fallthru
          _
        // Predicated region
        $region29: #{tpu_custom_call.1} parent=11 // pred_check
          %p661 = pneg %p528
        $region30: #{tpu_custom_call.1} parent=11 // pred_check_branch
          %663 = sbr.rel (%p661) target = $region32
        $region31: #{tpu_custom_call.1} parent=11 // pred_region
          _
        $region32: #{tpu_custom_call.1} parent=11 // pred_fallthru
          _
        // Predicated region
        $region33: #{tpu_custom_call.1} parent=11 // pred_check
          %p664 = pneg %p549
        $region34: #{tpu_custom_call.1} parent=11 // pred_check_branch
          %666 = sbr.rel (%p664) target = $region36
        $region35: #{tpu_custom_call.1} parent=11 // pred_region
          %668 = vsyncadd [#allocation23], 0
          %s669 = sshll.u32 %s19, 4
          %s670 = int_to_ptr.hbm [resolvable:$true] %s669
          %s671 = sshll.u32 [#allocation24], 4
          %s672 = int_to_ptr.vmem [resolvable:$true] %s671
          %677 = dma.hbm_to_vmem [thread:$0]  %s670, 1024, %s672, [#allocation23], 64, 64, 4
        $region36: #{tpu_custom_call.1} parent=11 // pred_fallthru
          _
        // Predicated region
        $region37: #{tpu_custom_call.1} parent=11 // pred_check
          %p678 = pneg %p570
        $region38: #{tpu_custom_call.1} parent=11 // pred_check_branch
          %680 = sbr.rel (%p678) target = $region40
        $region39: #{tpu_custom_call.1} parent=11 // pred_region
          _
        $region40: #{tpu_custom_call.1} parent=11 // pred_fallthru
          _
      $region12: #{tpu_custom_call.1} parent=5 // pred_fallthru
        _
      %p681 = scmp.lt.s32.totalorder %s47, 4
      // Predicated region
      $region41: #{tpu_custom_call.1} parent=5 // pred_check
        %p682 = pneg %p681
      $region42: #{tpu_custom_call.1} parent=5 // pred_check_branch
        %684 = sbr.rel (%p682) target = $region44
      $region43: #{tpu_custom_call.1} parent=5 // pred_region
        // Predicated region
        $region45: #{tpu_custom_call.1} parent=43 // pred_check
          %p685 = pneg %p79
        $region46: #{tpu_custom_call.1} parent=43 // pred_check_branch
          %687 = sbr.rel (%p685) target = $region48
        $region47: #{tpu_custom_call.1} parent=43 // pred_region
          %s688 = sand.u32 %s69, 1
          %s689 = scalar_lea.sflag [#allocation5], %s688
          %s690 = sand.u32 %s69, 1
          %s691 = smul.addr %s690, 8
          %s692 = scalar_lea.vmem [#allocation4], %s691
          %694 = vsyncadd %s689, 0
          %s695 = smul.addr %s54, 8
          %s696 = scalar_lea.hbm %s0, %s695
          %s698 = sshll.u32 %s696, 4
          %s699 = int_to_ptr.hbm [resolvable:$true] %s698
          %s700 = sshll.u32 %s692, 4
          %s701 = int_to_ptr.vmem [resolvable:$true] %s700
          %703 = dma.hbm_to_vmem [thread:$0]  %s699, 128, %s701, %s689
        $region48: #{tpu_custom_call.1} parent=43 // pred_fallthru
          _
        // Predicated region
        $region49: #{tpu_custom_call.1} parent=43 // pred_check
          %p704 = pneg %p105
        $region50: #{tpu_custom_call.1} parent=43 // pred_check_branch
          %706 = sbr.rel (%p704) target = $region52
        $region51: #{tpu_custom_call.1} parent=43 // pred_region
          %s707 = sand.u32 %s47, 1
          %s708 = scalar_lea.sflag [#allocation8], %s707
          %s709 = sand.u32 %s95, 1
          %s710 = scalar_lea.vmem [#allocation7], %s709
          %712 = vsyncadd %s708, 0
          %s713 = scalar_lea.hbm %s1, %s54
          %s715 = sshll.u32 %s713, 4
          %s716 = int_to_ptr.hbm [resolvable:$true] %s715
          %s717 = sshll.u32 %s710, 4
          %s718 = int_to_ptr.vmem [resolvable:$true] %s717
          %720 = dma.hbm_to_vmem [thread:$0]  %s716, 16, %s718, %s708
        $region52: #{tpu_custom_call.1} parent=43 // pred_fallthru
          _
        // Predicated region
        $region53: #{tpu_custom_call.1} parent=43 // pred_check
          %p721 = pneg %p194
        $region54: #{tpu_custom_call.1} parent=43 // pred_check_branch
          %723 = sbr.rel (%p721) target = $region56
        $region55: #{tpu_custom_call.1} parent=43 // pred_region
          %s724 = sand.u32 %s47, 1
          %s725 = scalar_lea.sflag [#allocation14], %s724
          %s726 = sand.u32 %s184, 1
          %s727 = smul.addr %s726, 192
          %s728 = scalar_lea.vmem [#allocation13], %s727
          %730 = vsyncadd %s725, 0
          %s731 = smul.addr %s55, 48
          %s732 = smul.addr %s731, 4
          %s733 = scalar_lea.hbm %s5, %s732
          %s734 = sshll.u32 %s733, 4
          %s735 = int_to_ptr.hbm [resolvable:$true] %s734
          %s736 = sshll.u32 %s728, 4
          %s737 = int_to_ptr.vmem [resolvable:$true] %s736
          %742 = dma.hbm_to_vmem [thread:$0]  %s735, 3072, %s737, %s725, 192, 192, 12
        $region56: #{tpu_custom_call.1} parent=43 // pred_fallthru
          _
        // Predicated region
        $region57: #{tpu_custom_call.1} parent=43 // pred_check
          %p743 = pneg %p220
        $region58: #{tpu_custom_call.1} parent=43 // pred_check_branch
          %745 = sbr.rel (%p743) target = $region60
        $region59: #{tpu_custom_call.1} parent=43 // pred_region
          %s746 = sand.u32 %s47, 1
          %s747 = scalar_lea.sflag [#allocation14], %s746
          %s748 = sand.u32 %s210, 1
          %s749 = smul.addr %s748, 3
          %s750 = scalar_lea.vmem [#allocation15], %s749
          %752 = vsyncadd %s747, 0
          %s753 = smul.addr %s55, 3
          %s754 = scalar_lea.hbm %s6, %s753
          %s756 = sshll.u32 %s754, 4
          %s757 = int_to_ptr.hbm [resolvable:$true] %s756
          %s758 = sshll.u32 %s750, 4
          %s759 = int_to_ptr.vmem [resolvable:$true] %s758
          %761 = dma.hbm_to_vmem [thread:$0]  %s757, 48, %s759, %s747
        $region60: #{tpu_custom_call.1} parent=43 // pred_fallthru
          _
        // Predicated region
        $region61: #{tpu_custom_call.1} parent=43 // pred_check
          %p762 = pneg %p246
        $region62: #{tpu_custom_call.1} parent=43 // pred_check_branch
          %764 = sbr.rel (%p762) target = $region64
        $region63: #{tpu_custom_call.1} parent=43 // pred_region
          %s765 = sand.u32 %s47, 1
          %s766 = scalar_lea.sflag [#allocation17], %s765
          %s767 = sand.u32 %s236, 1
          %s768 = smul.addr %s767, 64
          %s769 = scalar_lea.vmem [#allocation16], %s768
          %771 = vsyncadd %s766, 0
          %s772 = smul.addr %s55, 16
          %s773 = smul.addr %s772, 4
          %s774 = scalar_lea.hbm %s7, %s773
          %s775 = sshll.u32 %s774, 4
          %s776 = int_to_ptr.hbm [resolvable:$true] %s775
          %s777 = sshll.u32 %s769, 4
          %s778 = int_to_ptr.vmem [resolvable:$true] %s777
          %783 = dma.hbm_to_vmem [thread:$0]  %s776, 1024, %s778, %s766, 64, 64, 4
        $region64: #{tpu_custom_call.1} parent=43 // pred_fallthru
          _
        // Predicated region
        $region65: #{tpu_custom_call.1} parent=43 // pred_check
          %p784 = pneg %p272
        $region66: #{tpu_custom_call.1} parent=43 // pred_check_branch
          %786 = sbr.rel (%p784) target = $region68
        $region67: #{tpu_custom_call.1} parent=43 // pred_region
          %p787 = scmp.lt.s32.totalorder %s55, 1
          %s788 = scalar_select %p787, %s55, 1
          %s789 = scalar_lea.vmem %s8, %s788
        $region68: #{tpu_custom_call.1} parent=43 // pred_fallthru
          _
        // Predicated region
        $region69: #{tpu_custom_call.1} parent=43 // pred_check
          %p790 = pneg %p298
        $region70: #{tpu_custom_call.1} parent=43 // pred_check_branch
          %792 = sbr.rel (%p790) target = $region72
        $region71: #{tpu_custom_call.1} parent=43 // pred_region
          %p793 = scmp.lt.s32.totalorder %s55, 1
          %s794 = scalar_select %p793, %s55, 1
          %s795 = scalar_lea.vmem %s9, %s794
        $region72: #{tpu_custom_call.1} parent=43 // pred_fallthru
          _
        // Predicated region
        $region73: #{tpu_custom_call.1} parent=43 // pred_check
          %p796 = pneg %p324
        $region74: #{tpu_custom_call.1} parent=43 // pred_check_branch
          %798 = sbr.rel (%p796) target = $region76
        $region75: #{tpu_custom_call.1} parent=43 // pred_region
          %s799 = sand.u32 %s47, 1
          %s800 = scalar_lea.sflag [#allocation17], %s799
          %s801 = sand.u32 %s314, 1
          %s802 = scalar_lea.vmem [#allocation18], %s801
          %804 = vsyncadd %s800, 0
          %s805 = scalar_lea.hbm %s10, %s55
          %s807 = sshll.u32 %s805, 4
          %s808 = int_to_ptr.hbm [resolvable:$true] %s807
          %s809 = sshll.u32 %s802, 4
          %s810 = int_to_ptr.vmem [resolvable:$true] %s809
          %812 = dma.hbm_to_vmem [thread:$0]  %s808, 16, %s810, %s800
        $region76: #{tpu_custom_call.1} parent=43 // pred_fallthru
          _
        // Predicated region
        $region77: #{tpu_custom_call.1} parent=43 // pred_check
          %p813 = pneg %p350
        $region78: #{tpu_custom_call.1} parent=43 // pred_check_branch
          %815 = sbr.rel (%p813) target = $region80
        $region79: #{tpu_custom_call.1} parent=43 // pred_region
          %s816 = sand.u32 %s47, 1
          %s817 = scalar_lea.sflag [#allocation20], %s816
          %s818 = sand.u32 %s340, 1
          %s819 = smul.addr %s818, 128
          %s820 = scalar_lea.vmem [#allocation19], %s819
          %822 = vsyncadd %s817, 0
          %s823 = smul.addr %s55, 32
          %s824 = smul.addr %s823, 4
          %s825 = scalar_lea.hbm %s11, %s824
          %s826 = sshll.u32 %s825, 4
          %s827 = int_to_ptr.hbm [resolvable:$true] %s826
          %s828 = sshll.u32 %s820, 4
          %s829 = int_to_ptr.vmem [resolvable:$true] %s828
          %834 = dma.hbm_to_vmem [thread:$0]  %s827, 2048, %s829, %s817, 128, 128, 8
        $region80: #{tpu_custom_call.1} parent=43 // pred_fallthru
          _
        // Predicated region
        $region81: #{tpu_custom_call.1} parent=43 // pred_check
          %p835 = pneg %p376
        $region82: #{tpu_custom_call.1} parent=43 // pred_check_branch
          %837 = sbr.rel (%p835) target = $region84
        $region83: #{tpu_custom_call.1} parent=43 // pred_region
          %p838 = scmp.lt.s32.totalorder %s55, 1
          %s839 = scalar_select %p838, %s55, 1
          %s840 = smul.addr %s839, 2
          %s841 = scalar_lea.vmem %s12, %s840
        $region84: #{tpu_custom_call.1} parent=43 // pred_fallthru
          _
        // Predicated region
        $region85: #{tpu_custom_call.1} parent=43 // pred_check
          %p842 = pneg %p402
        $region86: #{tpu_custom_call.1} parent=43 // pred_check_branch
          %844 = sbr.rel (%p842) target = $region88
        $region87: #{tpu_custom_call.1} parent=43 // pred_region
          %s845 = sand.u32 %s47, 1
          %s846 = scalar_lea.sflag [#allocation20], %s845
          %s847 = sand.u32 %s392, 1
          %s848 = smul.addr %s847, 128
          %s849 = scalar_lea.vmem [#allocation21], %s848
          %851 = vsyncadd %s846, 0
          %s852 = smul.addr %s55, 32
          %s853 = smul.addr %s852, 4
          %s854 = scalar_lea.hbm %s13, %s853
          %s855 = sshll.u32 %s854, 4
          %s856 = int_to_ptr.hbm [resolvable:$true] %s855
          %s857 = sshll.u32 %s849, 4
          %s858 = int_to_ptr.vmem [resolvable:$true] %s857
          %863 = dma.hbm_to_vmem [thread:$0]  %s856, 2048, %s858, %s846, 64, 64, 4
        $region88: #{tpu_custom_call.1} parent=43 // pred_fallthru
          _
        // Predicated region
        $region89: #{tpu_custom_call.1} parent=43 // pred_check
          %p864 = pneg %p428
        $region90: #{tpu_custom_call.1} parent=43 // pred_check_branch
          %866 = sbr.rel (%p864) target = $region92
        $region91: #{tpu_custom_call.1} parent=43 // pred_region
          %p867 = scmp.lt.s32.totalorder %s55, 1
          %s868 = scalar_select %p867, %s55, 1
          %s869 = scalar_lea.vmem %s14, %s868
        $region92: #{tpu_custom_call.1} parent=43 // pred_fallthru
          _
        // Predicated region
        $region93: #{tpu_custom_call.1} parent=43 // pred_check
          %p870 = pneg %p454
        $region94: #{tpu_custom_call.1} parent=43 // pred_check_branch
          %872 = sbr.rel (%p870) target = $region96
        $region95: #{tpu_custom_call.1} parent=43 // pred_region
          %p873 = scmp.lt.s32.totalorder %s55, 1
          %s874 = scalar_select %p873, %s55, 1
          %s875 = scalar_lea.vmem %s15, %s874
        $region96: #{tpu_custom_call.1} parent=43 // pred_fallthru
          _
        // Predicated region
        $region97: #{tpu_custom_call.1} parent=43 // pred_check
          %p876 = pneg %p480
        $region98: #{tpu_custom_call.1} parent=43 // pred_check_branch
          %878 = sbr.rel (%p876) target = $region100
        $region99: #{tpu_custom_call.1} parent=43 // pred_region
          %p879 = scmp.lt.s32.totalorder %s55, 1
          %s880 = scalar_select %p879, %s55, 1
          %s881 = scalar_lea.vmem %s16, %s880
        $region100: #{tpu_custom_call.1} parent=43 // pred_fallthru
          _
      $region44: #{tpu_custom_call.1} parent=5 // pred_fallthru
        _
      %p882 = scmp.le.s32.totalorder 1, %s47
      %p883 = scmp.lt.s32.totalorder %s47, 5
      %p884 = pnand %p882, %p883
      %p885 = pneg %p884
      // Predicated region
      $region101: #{tpu_custom_call.1} parent=5 // pred_check
        _
      $region102: #{tpu_custom_call.1} parent=5 // pred_check_branch
        %887 = sbr.rel (%p884) target = $region104
      $region103: #{tpu_custom_call.1} parent=5 // pred_region
        %s888 = ssub.s32 %s47, 1
        %s889 = sand.u32 %s72, 1
        %s890 = scalar_lea.sflag [#allocation5], %s889
        %s891 = sand.u32 %s72, 1
        %s892 = smul.addr %s891, 8
        %s893 = scalar_lea.vmem [#allocation4], %s892
        // Predicated region
        $region105: #{tpu_custom_call.1} parent=103 // pred_check
          %p894 = pneg %p85
        $region106: #{tpu_custom_call.1} parent=103 // pred_check_branch
          %896 = sbr.rel (%p894) target = $region108
        $region107: #{tpu_custom_call.1} parent=103 // pred_region
          %898 = dma.done %s890, 128
        $region108: #{tpu_custom_call.1} parent=103 // pred_fallthru
          _
        %s899 = sand.u32 %s52, 1
        %s900 = scalar_lea.sflag [#allocation8], %s899
        %s901 = sand.u32 %s98, 1
        %s902 = scalar_lea.vmem [#allocation7], %s901
        // Predicated region
        $region109: #{tpu_custom_call.1} parent=103 // pred_check
          %p903 = pneg %p111
        $region110: #{tpu_custom_call.1} parent=103 // pred_check_branch
          %905 = sbr.rel (%p903) target = $region112
        $region111: #{tpu_custom_call.1} parent=103 // pred_region
          %907 = dma.done %s900, 16
        $region112: #{tpu_custom_call.1} parent=103 // pred_fallthru
          _
        // Predicated region
        $region113: #{tpu_custom_call.1} parent=103 // pred_check
          %p908 = pneg %p132
        $region114: #{tpu_custom_call.1} parent=103 // pred_check_branch
          %910 = sbr.rel (%p908) target = $region116
        $region115: #{tpu_custom_call.1} parent=103 // pred_region
          %912 = dma.done [#allocation8], 64
        $region116: #{tpu_custom_call.1} parent=103 // pred_fallthru
          _
        // Predicated region
        $region117: #{tpu_custom_call.1} parent=103 // pred_check
          %p913 = pneg %p153
        $region118: #{tpu_custom_call.1} parent=103 // pred_check_branch
          %915 = sbr.rel (%p913) target = $region120
        $region119: #{tpu_custom_call.1} parent=103 // pred_region
          %917 = dma.done [#allocation11], 16
        $region120: #{tpu_custom_call.1} parent=103 // pred_fallthru
          _
        // Predicated region
        $region121: #{tpu_custom_call.1} parent=103 // pred_check
          %p918 = pneg %p174
        $region122: #{tpu_custom_call.1} parent=103 // pred_check_branch
          %920 = sbr.rel (%p918) target = $region124
        $region123: #{tpu_custom_call.1} parent=103 // pred_region
          %922 = dma.done [#allocation11], 16
        $region124: #{tpu_custom_call.1} parent=103 // pred_fallthru
          _
        %s923 = sand.u32 %s52, 1
        %s924 = scalar_lea.sflag [#allocation14], %s923
        %s925 = sand.u32 %s187, 1
        %s926 = smul.addr %s925, 192
        %s927 = scalar_lea.vmem [#allocation13], %s926
        // Predicated region
        $region125: #{tpu_custom_call.1} parent=103 // pred_check
          %p928 = pneg %p200
        $region126: #{tpu_custom_call.1} parent=103 // pred_check_branch
          %930 = sbr.rel (%p928) target = $region128
        $region127: #{tpu_custom_call.1} parent=103 // pred_region
          %932 = dma.done %s924, 3072
        $region128: #{tpu_custom_call.1} parent=103 // pred_fallthru
          _
        %s933 = sand.u32 %s52, 1
        %s934 = scalar_lea.sflag [#allocation14], %s933
        %s935 = sand.u32 %s213, 1
        %s936 = smul.addr %s935, 3
        %s937 = scalar_lea.vmem [#allocation15], %s936
        // Predicated region
        $region129: #{tpu_custom_call.1} parent=103 // pred_check
          %p938 = pneg %p226
        $region130: #{tpu_custom_call.1} parent=103 // pred_check_branch
          %940 = sbr.rel (%p938) target = $region132
        $region131: #{tpu_custom_call.1} parent=103 // pred_region
          %942 = dma.done %s934, 48
        $region132: #{tpu_custom_call.1} parent=103 // pred_fallthru
          _
        %s943 = sand.u32 %s52, 1
        %s944 = scalar_lea.sflag [#allocation17], %s943
        %s945 = sand.u32 %s239, 1
        %s946 = smul.addr %s945, 64
        %s947 = scalar_lea.vmem [#allocation16], %s946
        // Predicated region
        $region133: #{tpu_custom_call.1} parent=103 // pred_check
          %p948 = pneg %p252
        $region134: #{tpu_custom_call.1} parent=103 // pred_check_branch
          %950 = sbr.rel (%p948) target = $region136
        $region135: #{tpu_custom_call.1} parent=103 // pred_region
          %952 = dma.done %s944, 1024
        $region136: #{tpu_custom_call.1} parent=103 // pred_fallthru
          _
        %s953 = sand.u32 %s52, 1
        %s954 = scalar_lea.sflag [#allocation17], %s953
        %s955 = sand.u32 %s317, 1
        %s956 = scalar_lea.vmem [#allocation18], %s955
        // Predicated region
        $region137: #{tpu_custom_call.1} parent=103 // pred_check
          %p957 = pneg %p330
        $region138: #{tpu_custom_call.1} parent=103 // pred_check_branch
          %959 = sbr.rel (%p957) target = $region140
        $region139: #{tpu_custom_call.1} parent=103 // pred_region
          %961 = dma.done %s954, 16
        $region140: #{tpu_custom_call.1} parent=103 // pred_fallthru
          _
        %s962 = sand.u32 %s52, 1
        %s963 = scalar_lea.sflag [#allocation20], %s962
        %s964 = sand.u32 %s343, 1
        %s965 = smul.addr %s964, 128
        %s966 = scalar_lea.vmem [#allocation19], %s965
        // Predicated region
        $region141: #{tpu_custom_call.1} parent=103 // pred_check
          %p967 = pneg %p356
        $region142: #{tpu_custom_call.1} parent=103 // pred_check_branch
          %969 = sbr.rel (%p967) target = $region144
        $region143: #{tpu_custom_call.1} parent=103 // pred_region
          %971 = dma.done %s963, 2048
        $region144: #{tpu_custom_call.1} parent=103 // pred_fallthru
          _
        %s972 = sand.u32 %s52, 1
        %s973 = scalar_lea.sflag [#allocation20], %s972
        %s974 = sand.u32 %s395, 1
        %s975 = smul.addr %s974, 128
        %s976 = scalar_lea.vmem [#allocation21], %s975
        // Predicated region
        $region145: #{tpu_custom_call.1} parent=103 // pred_check
          %p977 = pneg %p408
        $region146: #{tpu_custom_call.1} parent=103 // pred_check_branch
          %979 = sbr.rel (%p977) target = $region148
        $region147: #{tpu_custom_call.1} parent=103 // pred_region
          %981 = dma.done %s973, 2048
        $region148: #{tpu_custom_call.1} parent=103 // pred_fallthru
          _
        // Predicated region
        $region149: #{tpu_custom_call.1} parent=103 // pred_check
          %p982 = pneg %p507
        $region150: #{tpu_custom_call.1} parent=103 // pred_check_branch
          %984 = sbr.rel (%p982) target = $region152
        $region151: #{tpu_custom_call.1} parent=103 // pred_region
          %986 = dma.done [#allocation23], 1024
        $region152: #{tpu_custom_call.1} parent=103 // pred_fallthru
          _
        // Predicated region
        $region153: #{tpu_custom_call.1} parent=103 // pred_check
          %p987 = pneg %p549
        $region154: #{tpu_custom_call.1} parent=103 // pred_check_branch
          %989 = sbr.rel (%p987) target = $region156
        $region155: #{tpu_custom_call.1} parent=103 // pred_region
          %991 = dma.done [#allocation23], 1024
        $region156: #{tpu_custom_call.1} parent=103 // pred_fallthru
          _
        %s992 = sand.u32 %s72, 1
        %s993 = scalar_lea.sflag [#allocation5], %s992
        %s994 = sand.u32 %s72, 1
        %s995 = smul.addr %s994, 8
        %s996 = scalar_lea.vmem [#allocation4], %s995
        %p997 = pneg %p85
        %p998 = pneg %p82
        %s999 = sand.u32 %s52, 1
        %s1000 = scalar_lea.sflag [#allocation8], %s999
        %s1001 = sand.u32 %s98, 1
        %s1002 = scalar_lea.vmem [#allocation7], %s1001
        %p1003 = pneg %p111
        %p1004 = pneg %p108
        %p1005 = pneg %p132
        %p1006 = pneg %p129
        %p1007 = pneg %p153
        %p1008 = pneg %p150
        %p1009 = pneg %p174
        %p1010 = pneg %p171
        %s1011 = sand.u32 %s52, 1
        %s1012 = scalar_lea.sflag [#allocation14], %s1011
        %s1013 = sand.u32 %s187, 1
        %s1014 = smul.addr %s1013, 192
        %s1015 = scalar_lea.vmem [#allocation13], %s1014
        %p1016 = pneg %p200
        %p1017 = pneg %p197
        %s1018 = sand.u32 %s52, 1
        %s1019 = scalar_lea.sflag [#allocation14], %s1018
        %s1020 = sand.u32 %s213, 1
        %s1021 = smul.addr %s1020, 3
        %s1022 = scalar_lea.vmem [#allocation15], %s1021
        %p1023 = pneg %p226
        %p1024 = pneg %p223
        %s1025 = sand.u32 %s52, 1
        %s1026 = scalar_lea.sflag [#allocation17], %s1025
        %s1027 = sand.u32 %s239, 1
        %s1028 = smul.addr %s1027, 64
        %s1029 = scalar_lea.vmem [#allocation16], %s1028
        %p1030 = pneg %p252
        %p1031 = pneg %p249
        %p1032 = scmp.lt.s32.totalorder %s57, 1
        %s1033 = scalar_select %p1032, %s57, 1
        %s1034 = scalar_lea.vmem %s8, %s1033
        %p1035 = pneg %p278
        %p1036 = pneg %p275
        %p1037 = scmp.lt.s32.totalorder %s57, 1
        %s1038 = scalar_select %p1037, %s57, 1
        %s1039 = scalar_lea.vmem %s9, %s1038
        %p1040 = pneg %p304
        %p1041 = pneg %p301
        %s1042 = sand.u32 %s52, 1
        %s1043 = scalar_lea.sflag [#allocation17], %s1042
        %s1044 = sand.u32 %s317, 1
        %s1045 = scalar_lea.vmem [#allocation18], %s1044
        %p1046 = pneg %p330
        %p1047 = pneg %p327
        %s1048 = sand.u32 %s52, 1
        %s1049 = scalar_lea.sflag [#allocation20], %s1048
        %s1050 = sand.u32 %s343, 1
        %s1051 = smul.addr %s1050, 128
        %s1052 = scalar_lea.vmem [#allocation19], %s1051
        %p1053 = pneg %p356
        %p1054 = pneg %p353
        %p1055 = scmp.lt.s32.totalorder %s57, 1
        %s1056 = scalar_select %p1055, %s57, 1
        %s1057 = smul.addr %s1056, 2
        %s1058 = scalar_lea.vmem %s12, %s1057
        %p1059 = pneg %p382
        %p1060 = pneg %p379
        %s1061 = sand.u32 %s52, 1
        %s1062 = scalar_lea.sflag [#allocation20], %s1061
        %s1063 = sand.u32 %s395, 1
        %s1064 = smul.addr %s1063, 128
        %s1065 = scalar_lea.vmem [#allocation21], %s1064
        %p1066 = pneg %p408
        %p1067 = pneg %p405
        %p1068 = scmp.lt.s32.totalorder %s57, 1
        %s1069 = scalar_select %p1068, %s57, 1
        %s1070 = scalar_lea.vmem %s14, %s1069
        %p1071 = pneg %p434
        %p1072 = pneg %p431
        %p1073 = scmp.lt.s32.totalorder %s57, 1
        %s1074 = scalar_select %p1073, %s57, 1
        %s1075 = scalar_lea.vmem %s15, %s1074
        %p1076 = pneg %p460
        %p1077 = pneg %p457
        %p1078 = scmp.lt.s32.totalorder %s57, 1
        %s1079 = scalar_select %p1078, %s57, 1
        %s1080 = scalar_lea.vmem %s16, %s1079
        %p1081 = pneg %p486
        %p1082 = pneg %p483
        %p1083 = pneg %p507
        %p1084 = pneg %p504
        %p1085 = pneg %p528
        %p1086 = pneg %p525
        %p1087 = pneg %p549
        %p1088 = pneg %p546
        %p1089 = pneg %p570
        %p1090 = pneg %p567
        %p1091 = pneg %p596
        %p1092 = pneg %p593
        %s1093 = sand.u32 %s583, 1
        %s1094 = scalar_lea.sflag [#allocation6], %s1093
        %s1095 = sand.u32 %s583, 1
        %s1096 = scalar_lea.vmem [#allocation25], %s1095
        %p1097 = scmp.lt.s32.totalorder %s57, 1
        %s1098 = scalar_select %p1097, %s57, 1
        %s1099 = scalar_lea.vmem %s8, %s1098
        %p1100 = scmp.lt.s32.totalorder %s57, 1
        %s1101 = scalar_select %p1100, %s57, 1
        %s1102 = scalar_lea.vmem %s9, %s1101
        %p1103 = scmp.lt.s32.totalorder %s57, 1
        %s1104 = scalar_select %p1103, %s57, 1
        %s1105 = smul.addr %s1104, 2
        %s1106 = scalar_lea.vmem %s12, %s1105
        %p1107 = scmp.lt.s32.totalorder %s57, 1
        %s1108 = scalar_select %p1107, %s57, 1
        %s1109 = scalar_lea.vmem %s14, %s1108
        %p1110 = scmp.lt.s32.totalorder %s57, 1
        %s1111 = scalar_select %p1110, %s57, 1
        %s1112 = scalar_lea.vmem %s15, %s1111
        %p1113 = scmp.lt.s32.totalorder %s57, 1
        %s1114 = scalar_select %p1113, %s57, 1
        %s1115 = scalar_lea.vmem %s16, %s1114
        %p1117 = scmp.eq.s32.totalorder %s57, 0
        // Predicated region
        $region157: #{tpu_custom_call.1} parent=103 // pred_check
          %p1118 = pneg %p1117
        $region158: #{tpu_custom_call.1} parent=103 // pred_check_branch
          %1120 = sbr.rel (%p1118) target = $region160
        $region159: #{tpu_custom_call.1} parent=103 // pred_region
          %v1121 = vld [vmem:[%s893] sm:$0xff]
          %v1122 = vld [vmem:[#allocation10] sm:$0x1]
          %v1123 = vld [vmem:[#allocation12] sm:$0x1]
          %1124 = vadd.xlane.f32.xlu0 %v1121
          %v1125 = vpop.xlane.xlu0 %1124
          %v1126 = vrcp.pop 128.0
          %v1127 = vmul.f32 128.0, %v1126
          %v1128 = vsub.f32 1.0, %v1127
          %v1129 = vmul.f32 %v1126, %v1128
          %v1130 = vadd.f32 %v1126, %v1129
          %vm1131 = vweird.f32 %v1126
          %v1132 = vsel %vm1131, %v1126, %v1130
          %v1133 = vmul.f32 %v1125, %v1132
          %v1134 = vsub.f32 %v1121, %v1133
          %v1135 = vmul.f32 %v1134, %v1134
          %1136 = vadd.xlane.f32.xlu0 %v1135
          %v1137 = vpop.xlane.xlu0 %1136
          %v1138 = vmul.f32 %v1137, %v1132
          %v1139 = vadd.f32 %v1138, 1e-12
          %v1140 = vrsqrt.pop %v1139
          %v1141 = vmul.f32 %v1140, %v1139
          %v1142 = vmul.f32 %v1141, %v1140
          %v1143 = vmul.f32 0.5, %v1142
          %v1144 = vsub.f32 1.5, %v1143
          %v1145 = vmul.f32 %v1140, %v1144
          %vm1146 = vweird.f32 %v1139
          %vm1147 = vweird.f32 %v1140
          %vm1148 = vmor %vm1146, %vm1147
          %v1149 = vsel %vm1148, %v1140, %v1145
          %v1150 = vmul.f32 %v1134, %v1149
          %v1152 = vperm.slane %v1122, 0
          %v1154 = vmul.f32 %v1150, %v1152
          %v1156 = vperm.slane %v1123, 0
          %v1158 = vadd.f32 %v1154, %v1156
          %1159 = vst [vmem:[#allocation2] sm:$0xff] %v1158
        $region160: #{tpu_custom_call.1} parent=103 // pred_fallthru
          _
        %v1160 = vld [vmem:[#allocation2] sm:$0xff]
        %v1161 = vld [vmem:[%s902] sm:$0x1]
        %v1162 = vpack.c.bf16 %v1160, %v1160
        %v1163 = vld [vmem:[%s927] sm:$0xff]
        %v1164 = vld [vmem:[%s927 + $0x8] sm:$0xf]
        %v1165 = vld [vmem:[%s927 + $0xc] sm:$0xff]
        %v1166 = vld [vmem:[%s927 + $0x14] sm:$0xf]
        %v1167 = vld [vmem:[%s927 + $0x18] sm:$0xff]
        %v1168 = vld [vmem:[%s927 + $0x20] sm:$0xf]
        %v1169 = vld [vmem:[%s927 + $0x24] sm:$0xff]
        %v1170 = vld [vmem:[%s927 + $0x2c] sm:$0xf]
        %v1171 = vld [vmem:[%s927 + $0x30] sm:$0xff]
        %v1172 = vld [vmem:[%s927 + $0x38] sm:$0xf]
        %v1173 = vld [vmem:[%s927 + $0x3c] sm:$0xff]
        %v1174 = vld [vmem:[%s927 + $0x44] sm:$0xf]
        %v1175 = vld [vmem:[%s927 + $0x48] sm:$0xff]
        %v1176 = vld [vmem:[%s927 + $0x50] sm:$0xf]
        %v1177 = vld [vmem:[%s927 + $0x54] sm:$0xff]
        %v1178 = vld [vmem:[%s927 + $0x5c] sm:$0xf]
        %v1179 = vld [vmem:[%s927 + $0x60] sm:$0xff]
        %v1180 = vld [vmem:[%s927 + $0x68] sm:$0xf]
        %v1181 = vld [vmem:[%s927 + $0x6c] sm:$0xff]
        %v1182 = vld [vmem:[%s927 + $0x74] sm:$0xf]
        %v1183 = vld [vmem:[%s927 + $0x78] sm:$0xff]
        %v1184 = vld [vmem:[%s927 + $0x80] sm:$0xf]
        %v1185 = vld [vmem:[%s927 + $0x84] sm:$0xff]
        %v1186 = vld [vmem:[%s927 + $0x8c] sm:$0xf]
        %v1187 = vld [vmem:[%s927 + $0x90] sm:$0xff]
        %v1188 = vld [vmem:[%s927 + $0x98] sm:$0xf]
        %v1189 = vld [vmem:[%s927 + $0x9c] sm:$0xff]
        %v1190 = vld [vmem:[%s927 + $0xa4] sm:$0xf]
        %v1191 = vld [vmem:[%s927 + $0xa8] sm:$0xff]
        %v1192 = vld [vmem:[%s927 + $0xb0] sm:$0xf]
        %v1193 = vld [vmem:[%s927 + $0xb4] sm:$0xff]
        %v1194 = vld [vmem:[%s927 + $0xbc] sm:$0xf]
        %v1195 = vld [vmem:[%s937] sm:$0x7]
        %v1197 = vperm.slane %v1195, 0
        %v1198 = vperm.slane %v1195, 1
        %v1199 = vperm.slane %v1195, 2
        %v1235 = vunpack.c.l.b16 %v1163
        %v1236 = vunpack.c.h.b16 %v1163
        %v1237 = vunpack.c.l.b16 %v1164
        %v1238 = vunpack.c.l.b16 %v1165
        %v1239 = vunpack.c.h.b16 %v1165
        %v1240 = vunpack.c.l.b16 %v1166
        %v1241 = vunpack.c.l.b16 %v1167
        %v1242 = vunpack.c.h.b16 %v1167
        %v1243 = vunpack.c.l.b16 %v1168
        %v1244 = vunpack.c.l.b16 %v1169
        %v1245 = vunpack.c.h.b16 %v1169
        %v1246 = vunpack.c.l.b16 %v1170
        %v1247 = vunpack.c.l.b16 %v1171
        %v1248 = vunpack.c.h.b16 %v1171
        %v1249 = vunpack.c.l.b16 %v1172
        %v1250 = vunpack.c.l.b16 %v1173
        %v1251 = vunpack.c.h.b16 %v1173
        %v1252 = vunpack.c.l.b16 %v1174
        %v1253 = vunpack.c.l.b16 %v1175
        %v1254 = vunpack.c.h.b16 %v1175
        %v1255 = vunpack.c.l.b16 %v1176
        %v1256 = vunpack.c.l.b16 %v1177
        %v1257 = vunpack.c.h.b16 %v1177
        %v1258 = vunpack.c.l.b16 %v1178
        %v1259 = vunpack.c.l.b16 %v1179
        %v1260 = vunpack.c.h.b16 %v1179
        %v1261 = vunpack.c.l.b16 %v1180
        %v1262 = vunpack.c.l.b16 %v1181
        %v1263 = vunpack.c.h.b16 %v1181
        %v1264 = vunpack.c.l.b16 %v1182
        %v1265 = vunpack.c.l.b16 %v1183
        %v1266 = vunpack.c.h.b16 %v1183
        %v1267 = vunpack.c.l.b16 %v1184
        %v1268 = vunpack.c.l.b16 %v1185
        %v1269 = vunpack.c.h.b16 %v1185
        %v1270 = vunpack.c.l.b16 %v1186
        %v1271 = vunpack.c.l.b16 %v1187
        %v1272 = vunpack.c.h.b16 %v1187
        %v1273 = vunpack.c.l.b16 %v1188
        %v1274 = vunpack.c.l.b16 %v1189
        %v1275 = vunpack.c.h.b16 %v1189
        %v1276 = vunpack.c.l.b16 %v1190
        %v1277 = vunpack.c.l.b16 %v1191
        %v1278 = vunpack.c.h.b16 %v1191
        %v1279 = vunpack.c.l.b16 %v1192
        %v1280 = vunpack.c.l.b16 %v1193
        %v1281 = vunpack.c.h.b16 %v1193
        %v1282 = vunpack.c.l.b16 %v1194
        %v1283 = vpack.c.b16 %v1238, %v1235
        %v1284 = vpack.c.b16 %v1239, %v1236
        %v1285 = vpack.c.b16 %v1240, %v1237
        %v1286 = vpack.c.b16 %v1244, %v1241
        %v1287 = vpack.c.b16 %v1245, %v1242
        %v1288 = vpack.c.b16 %v1246, %v1243
        %v1289 = vpack.c.b16 %v1250, %v1247
        %v1290 = vpack.c.b16 %v1251, %v1248
        %v1291 = vpack.c.b16 %v1252, %v1249
        %v1292 = vpack.c.b16 %v1256, %v1253
        %v1293 = vpack.c.b16 %v1257, %v1254
        %v1294 = vpack.c.b16 %v1258, %v1255
        %v1295 = vpack.c.b16 %v1262, %v1259
        %v1296 = vpack.c.b16 %v1263, %v1260
        %v1297 = vpack.c.b16 %v1264, %v1261
        %v1298 = vpack.c.b16 %v1268, %v1265
        %v1299 = vpack.c.b16 %v1269, %v1266
        %v1300 = vpack.c.b16 %v1270, %v1267
        %v1301 = vpack.c.b16 %v1274, %v1271
        %v1302 = vpack.c.b16 %v1275, %v1272
        %v1303 = vpack.c.b16 %v1276, %v1273
        %v1304 = vpack.c.b16 %v1280, %v1277
        %v1305 = vpack.c.b16 %v1281, %v1278
        %v1306 = vpack.c.b16 %v1282, %v1279
        %1331 = vmatpush.bf16.msra.mxu0 %v1304
        %1332 = vmatpush.bf16.msra.mxu0 %v1301
        %1333 = vmatpush.bf16.msra.mxu0 %v1298
        %1334 = vmatpush.bf16.msra.mxu0 %v1295
        %1335 = vmatpush.bf16.msra.mxu0 %v1292
        %1336 = vmatpush.bf16.msra.mxu0 %v1289
        %1337 = vmatpush.bf16.msra.mxu0 %v1286
        %1338 = vmatpush.bf16.msra.mxu0 %v1283
        %1339 = vmatmul.bf16.gmra.mxu0 %v1162
        %v1340 = vpop.f32.mrf.mxu0
        %v1341 = vadd.f32 %v1197, %v1340
        %v1342 = vpop.f32.mrf.mxu0
        %1343 = vdwg.mxu0
        %1344 = vmatpush.bf16.msra.mxu0 %v1305
        %1345 = vmatpush.bf16.msra.mxu0 %v1302
        %1346 = vmatpush.bf16.msra.mxu0 %v1299
        %1347 = vmatpush.bf16.msra.mxu0 %v1296
        %1348 = vmatpush.bf16.msra.mxu0 %v1293
        %1349 = vmatpush.bf16.msra.mxu0 %v1290
        %1350 = vmatpush.bf16.msra.mxu0 %v1287
        %1351 = vmatpush.bf16.msra.mxu0 %v1284
        %1352 = vmatmul.bf16.gmra.mxu0 %v1162
        %v1353 = vpop.f32.mrf.mxu0
        %v1354 = vadd.f32 %v1198, %v1353
        %v1355 = vpop.f32.mrf.mxu0
        %1356 = vdwg.mxu0
        %1357 = vmatpush.bf16.msra.mxu0 %v1306
        %1358 = vmatpush.bf16.msra.mxu0 %v1303
        %1359 = vmatpush.bf16.msra.mxu0 %v1300
        %1360 = vmatpush.bf16.msra.mxu0 %v1297
        %1361 = vmatpush.bf16.msra.mxu0 %v1294
        %1362 = vmatpush.bf16.msra.mxu0 %v1291
        %1363 = vmatpush.bf16.msra.mxu0 %v1288
        %1364 = vmatpush.bf16.msra.mxu0 %v1285
        %1365 = vmatmul.bf16.gmra.mxu0 %v1162
        %v1366 = vpop.f32.mrf.mxu0
        %v1367 = vadd.f32 %v1199, %v1366
        %v1368 = vpop.f32.mrf.mxu0
        %1369 = vdwg.mxu0
        %v1370 = vmul.f32 %v1341, 0.17677669
        %v1371 = vpack.c.bf16 %v1354, %v1354
        %1372 = vst [vmem:[#allocation3] sm:$0xff] 0.0
        %v1373 = vld [vmem:[#allocation9] sm:$0x1]
        %v1374 = vperm.slane %v1373, 0
        %v1375 = vmul.f32 %v1370, %v1374
        %v1376 = vpack.c.bf16 %v1375, %v1375
        %v1378 = vperm.slane %v1161, 0
        %1380 = vmatpush.bf16.xpose.msra.mxu0 0
        %1381 = vmatpush.bf16.xpose.msra.mxu0 0
        %1382 = vmatpush.bf16.xpose.msra.mxu0 0
        %1383 = vmatpush.bf16.xpose.msra.mxu0 0
        %1384 = vmatpush.bf16.xpose.msra.mxu0 0
        %1385 = vmatpush.bf16.xpose.msra.mxu0 0
        %1386 = vmatpush.bf16.xpose.msra.mxu0 0
        %1387 = vmatpush.bf16.xpose.msra.mxu0 %v1371
        %1388 = vmatmul.bf16.gmra.mxu0 %v1376
        %v1389 = vpop.f32.mrf.mxu0
        %v1390 = vadd.f32 %v1378, %v1389
        %v1391 = vpop.f32.mrf.mxu0
        %1392 = vdwg.mxu0
        %vm1393 = vcmask 64512
        %v1394 = vsel %vm1393, %v1390, -inf
        %1395 = vmax.xlane.f32.xlu0 %v1394
        %v1396 = vpop.xlane.xlu0 %1395
        %v1397 = vsub.f32 %v1390, %v1396
        %v1398 = vmul.f32 %v1397, 1.442695
        %v1399 = vpow.pop %v1398
        %v1400 = vsel %vm1393, %v1399, 0.0
        %1401 = vadd.xlane.f32.xlu0 %v1400
        %v1402 = vpop.xlane.xlu0 %1401
        %v1403 = vrcp.pop %v1402
        %v1404 = vmul.f32 %v1399, %v1403
        %v1405 = vld [vmem:[#allocation3] sm:$0xff]
        %v1406 = vpack.c.bf16 %v1404, %v1404
        %v1407 = vmul.f32 %v1367, %v1374
        %v1408 = vpack.c.bf16 %v1407, %v1407
        %v1410 = vsel %vm1393, %v1406, 0
        %vm1412 = vcmask 1043456
        %v1414 = vsel %vm1412, %v1408, 0
        %1416 = vmatpush.bf16.msra.mxu0 0
        %1417 = vmatpush.bf16.msra.mxu0 0
        %1418 = vmatpush.bf16.msra.mxu0 0
        %1419 = vmatpush.bf16.msra.mxu0 0
        %1420 = vmatpush.bf16.msra.mxu0 0
        %1421 = vmatpush.bf16.msra.mxu0 0
        %1422 = vmatpush.bf16.msra.mxu0 0
        %1423 = vmatpush.bf16.msra.mxu0 %v1414
        %1424 = vmatmul.bf16.gmra.mxu0 %v1410
        %v1425 = vpop.f32.mrf.mxu0
        %v1426 = vadd.f32 0.0, %v1425
        %v1427 = vpop.f32.mrf.mxu0
        %1428 = vdwg.mxu0
        %v1429 = vadd.f32 %v1405, %v1426
        %1430 = vst [vmem:[#allocation3] sm:$0xff] %v1429
        %v1431 = vld [vmem:[#allocation9 + $0x1] sm:$0x1]
        %v1432 = vperm.slane %v1431, 0
        %v1433 = vmul.f32 %v1370, %v1432
        %v1434 = vpack.c.bf16 %v1433, %v1433
        %1435 = vmatpush.bf16.xpose.msra.mxu0 0
        %1436 = vmatpush.bf16.xpose.msra.mxu0 0
        %1437 = vmatpush.bf16.xpose.msra.mxu0 0
        %1438 = vmatpush.bf16.xpose.msra.mxu0 0
        %1439 = vmatpush.bf16.xpose.msra.mxu0 0
        %1440 = vmatpush.bf16.xpose.msra.mxu0 0
        %1441 = vmatpush.bf16.xpose.msra.mxu0 0
        %1442 = vmatpush.bf16.xpose.msra.mxu0 %v1371
        %1443 = vmatmul.bf16.gmra.mxu0 %v1434
        %v1444 = vpop.f32.mrf.mxu0
        %v1445 = vadd.f32 %v1378, %v1444
        %v1446 = vpop.f32.mrf.mxu0
        %1447 = vdwg.mxu0
        %v1448 = vsel %vm1393, %v1445, -inf
        %1449 = vmax.xlane.f32.xlu0 %v1448
        %v1450 = vpop.xlane.xlu0 %1449
        %v1451 = vsub.f32 %v1445, %v1450
        %v1452 = vmul.f32 %v1451, 1.442695
        %v1453 = vpow.pop %v1452
        %v1454 = vsel %vm1393, %v1453, 0.0
        %1455 = vadd.xlane.f32.xlu0 %v1454
        %v1456 = vpop.xlane.xlu0 %1455
        %v1457 = vrcp.pop %v1456
        %v1458 = vmul.f32 %v1453, %v1457
        %v1459 = vld [vmem:[#allocation3] sm:$0xff]
        %v1460 = vpack.c.bf16 %v1458, %v1458
        %v1461 = vmul.f32 %v1367, %v1432
        %v1462 = vpack.c.bf16 %v1461, %v1461
        %v1464 = vsel %vm1393, %v1460, 0
        %v1467 = vsel %vm1412, %v1462, 0
        %1469 = vmatpush.bf16.msra.mxu0 0
        %1470 = vmatpush.bf16.msra.mxu0 0
        %1471 = vmatpush.bf16.msra.mxu0 0
        %1472 = vmatpush.bf16.msra.mxu0 0
        %1473 = vmatpush.bf16.msra.mxu0 0
        %1474 = vmatpush.bf16.msra.mxu0 0
        %1475 = vmatpush.bf16.msra.mxu0 0
        %1476 = vmatpush.bf16.msra.mxu0 %v1467
        %1477 = vmatmul.bf16.gmra.mxu0 %v1464
        %v1478 = vpop.f32.mrf.mxu0
        %v1479 = vadd.f32 0.0, %v1478
        %v1480 = vpop.f32.mrf.mxu0
        %1481 = vdwg.mxu0
        %v1482 = vadd.f32 %v1459, %v1479
        %1483 = vst [vmem:[#allocation3] sm:$0xff] %v1482
        %v1484 = vld [vmem:[#allocation9 + $0x2] sm:$0x1]
        %v1485 = vperm.slane %v1484, 0
        %v1486 = vmul.f32 %v1370, %v1485
        %v1487 = vpack.c.bf16 %v1486, %v1486
        %1488 = vmatpush.bf16.xpose.msra.mxu0 0
        %1489 = vmatpush.bf16.xpose.msra.mxu0 0
        %1490 = vmatpush.bf16.xpose.msra.mxu0 0
        %1491 = vmatpush.bf16.xpose.msra.mxu0 0
        %1492 = vmatpush.bf16.xpose.msra.mxu0 0
        %1493 = vmatpush.bf16.xpose.msra.mxu0 0
        %1494 = vmatpush.bf16.xpose.msra.mxu0 0
        %1495 = vmatpush.bf16.xpose.msra.mxu0 %v1371
        %1496 = vmatmul.bf16.gmra.mxu0 %v1487
        %v1497 = vpop.f32.mrf.mxu0
        %v1498 = vadd.f32 %v1378, %v1497
        %v1499 = vpop.f32.mrf.mxu0
        %1500 = vdwg.mxu0
        %v1501 = vsel %vm1393, %v1498, -inf
        %1502 = vmax.xlane.f32.xlu0 %v1501
        %v1503 = vpop.xlane.xlu0 %1502
        %v1504 = vsub.f32 %v1498, %v1503
        %v1505 = vmul.f32 %v1504, 1.442695
        %v1506 = vpow.pop %v1505
        %v1507 = vsel %vm1393, %v1506, 0.0
        %1508 = vadd.xlane.f32.xlu0 %v1507
        %v1509 = vpop.xlane.xlu0 %1508
        %v1510 = vrcp.pop %v1509
        %v1511 = vmul.f32 %v1506, %v1510
        %v1512 = vld [vmem:[#allocation3] sm:$0xff]
        %v1513 = vpack.c.bf16 %v1511, %v1511
        %v1514 = vmul.f32 %v1367, %v1485
        %v1515 = vpack.c.bf16 %v1514, %v1514
        %v1517 = vsel %vm1393, %v1513, 0
        %v1520 = vsel %vm1412, %v1515, 0
        %1522 = vmatpush.bf16.msra.mxu0 0
        %1523 = vmatpush.bf16.msra.mxu0 0
        %1524 = vmatpush.bf16.msra.mxu0 0
        %1525 = vmatpush.bf16.msra.mxu0 0
        %1526 = vmatpush.bf16.msra.mxu0 0
        %1527 = vmatpush.bf16.msra.mxu0 0
        %1528 = vmatpush.bf16.msra.mxu0 0
        %1529 = vmatpush.bf16.msra.mxu0 %v1520
        %1530 = vmatmul.bf16.gmra.mxu0 %v1517
        %v1531 = vpop.f32.mrf.mxu0
        %v1532 = vadd.f32 0.0, %v1531
        %v1533 = vpop.f32.mrf.mxu0
        %1534 = vdwg.mxu0
        %v1535 = vadd.f32 %v1512, %v1532
        %1536 = vst [vmem:[#allocation3] sm:$0xff] %v1535
        %v1537 = vld [vmem:[#allocation9 + $0x3] sm:$0x1]
        %v1538 = vperm.slane %v1537, 0
        %v1539 = vmul.f32 %v1370, %v1538
        %v1540 = vpack.c.bf16 %v1539, %v1539
        %1541 = vmatpush.bf16.xpose.msra.mxu0 0
        %1542 = vmatpush.bf16.xpose.msra.mxu0 0
        %1543 = vmatpush.bf16.xpose.msra.mxu0 0
        %1544 = vmatpush.bf16.xpose.msra.mxu0 0
        %1545 = vmatpush.bf16.xpose.msra.mxu0 0
        %1546 = vmatpush.bf16.xpose.msra.mxu0 0
        %1547 = vmatpush.bf16.xpose.msra.mxu0 0
        %1548 = vmatpush.bf16.xpose.msra.mxu0 %v1371
        %1549 = vmatmul.bf16.gmra.mxu0 %v1540
        %v1550 = vpop.f32.mrf.mxu0
        %v1551 = vadd.f32 %v1378, %v1550
        %v1552 = vpop.f32.mrf.mxu0
        %1553 = vdwg.mxu0
        %v1554 = vsel %vm1393, %v1551, -inf
        %1555 = vmax.xlane.f32.xlu0 %v1554
        %v1556 = vpop.xlane.xlu0 %1555
        %v1557 = vsub.f32 %v1551, %v1556
        %v1558 = vmul.f32 %v1557, 1.442695
        %v1559 = vpow.pop %v1558
        %v1560 = vsel %vm1393, %v1559, 0.0
        %1561 = vadd.xlane.f32.xlu0 %v1560
        %v1562 = vpop.xlane.xlu0 %1561
        %v1563 = vrcp.pop %v1562
        %v1564 = vmul.f32 %v1559, %v1563
        %v1565 = vld [vmem:[#allocation3] sm:$0xff]
        %v1566 = vpack.c.bf16 %v1564, %v1564
        %v1567 = vmul.f32 %v1367, %v1538
        %v1568 = vpack.c.bf16 %v1567, %v1567
        %v1570 = vsel %vm1393, %v1566, 0
        %v1573 = vsel %vm1412, %v1568, 0
        %1575 = vmatpush.bf16.msra.mxu0 0
        %1576 = vmatpush.bf16.msra.mxu0 0
        %1577 = vmatpush.bf16.msra.mxu0 0
        %1578 = vmatpush.bf16.msra.mxu0 0
        %1579 = vmatpush.bf16.msra.mxu0 0
        %1580 = vmatpush.bf16.msra.mxu0 0
        %1581 = vmatpush.bf16.msra.mxu0 0
        %1582 = vmatpush.bf16.msra.mxu0 %v1573
        %1583 = vmatmul.bf16.gmra.mxu0 %v1570
        %v1584 = vpop.f32.mrf.mxu0
        %v1585 = vadd.f32 0.0, %v1584
        %v1586 = vpop.f32.mrf.mxu0
        %1587 = vdwg.mxu0
        %v1588 = vadd.f32 %v1565, %v1585
        %1589 = vst [vmem:[#allocation3] sm:$0xff] %v1588
        %v1590 = vld [vmem:[#allocation3] sm:$0xff]
        %v1591 = vpack.c.bf16 %v1590, %v1590
        %v1592 = vld [vmem:[%s947] sm:$0xf]
        %v1593 = vld [vmem:[%s947 + $0x4] sm:$0xf]
        %v1594 = vld [vmem:[%s947 + $0x8] sm:$0xf]
        %v1595 = vld [vmem:[%s947 + $0xc] sm:$0xf]
        %v1596 = vld [vmem:[%s947 + $0x10] sm:$0xf]
        %v1597 = vld [vmem:[%s947 + $0x14] sm:$0xf]
        %v1598 = vld [vmem:[%s947 + $0x18] sm:$0xf]
        %v1599 = vld [vmem:[%s947 + $0x1c] sm:$0xf]
        %v1600 = vld [vmem:[%s947 + $0x20] sm:$0xf]
        %v1601 = vld [vmem:[%s947 + $0x24] sm:$0xf]
        %v1602 = vld [vmem:[%s947 + $0x28] sm:$0xf]
        %v1603 = vld [vmem:[%s947 + $0x2c] sm:$0xf]
        %v1604 = vld [vmem:[%s947 + $0x30] sm:$0xf]
        %v1605 = vld [vmem:[%s947 + $0x34] sm:$0xf]
        %v1606 = vld [vmem:[%s947 + $0x38] sm:$0xf]
        %v1607 = vld [vmem:[%s947 + $0x3c] sm:$0xf]
        %v1608 = vld [vmem:[%s1099] sm:$0x1]
        %v1610 = vperm.slane %v1608, 0
        %v1628 = vunpack.c.l.b16 %v1592
        %v1629 = vunpack.c.l.b16 %v1593
        %v1630 = vunpack.c.l.b16 %v1594
        %v1631 = vunpack.c.l.b16 %v1595
        %v1632 = vunpack.c.l.b16 %v1596
        %v1633 = vunpack.c.l.b16 %v1597
        %v1634 = vunpack.c.l.b16 %v1598
        %v1635 = vunpack.c.l.b16 %v1599
        %v1636 = vunpack.c.l.b16 %v1600
        %v1637 = vunpack.c.l.b16 %v1601
        %v1638 = vunpack.c.l.b16 %v1602
        %v1639 = vunpack.c.l.b16 %v1603
        %v1640 = vunpack.c.l.b16 %v1604
        %v1641 = vunpack.c.l.b16 %v1605
        %v1642 = vunpack.c.l.b16 %v1606
        %v1643 = vunpack.c.l.b16 %v1607
        %v1644 = vpack.c.b16 %v1629, %v1628
        %v1645 = vpack.c.b16 %v1631, %v1630
        %v1646 = vpack.c.b16 %v1633, %v1632
        %v1647 = vpack.c.b16 %v1635, %v1634
        %v1648 = vpack.c.b16 %v1637, %v1636
        %v1649 = vpack.c.b16 %v1639, %v1638
        %v1650 = vpack.c.b16 %v1641, %v1640
        %v1651 = vpack.c.b16 %v1643, %v1642
        %1660 = vmatpush.bf16.msra.mxu0 %v1651
        %1661 = vmatpush.bf16.msra.mxu0 %v1650
        %1662 = vmatpush.bf16.msra.mxu0 %v1649
        %1663 = vmatpush.bf16.msra.mxu0 %v1648
        %1664 = vmatpush.bf16.msra.mxu0 %v1647
        %1665 = vmatpush.bf16.msra.mxu0 %v1646
        %1666 = vmatpush.bf16.msra.mxu0 %v1645
        %1667 = vmatpush.bf16.msra.mxu0 %v1644
        %1668 = vmatmul.bf16.gmra.mxu0 %v1591
        %v1669 = vpop.f32.mrf.mxu0
        %v1670 = vadd.f32 %v1610, %v1669
        %v1671 = vpop.f32.mrf.mxu0
        %1672 = vdwg.mxu0
        %v1673 = vadd.f32 %v1160, %v1670
        %v1674 = vld [vmem:[%s1102] sm:$0x1]
        %v1675 = vld [vmem:[%s956] sm:$0x1]
        %1676 = vadd.xlane.f32.xlu0 %v1673
        %v1677 = vpop.xlane.xlu0 %1676
        %v1678 = vrcp.pop 128.0
        %v1679 = vmul.f32 128.0, %v1678
        %v1680 = vsub.f32 1.0, %v1679
        %v1681 = vmul.f32 %v1678, %v1680
        %v1682 = vadd.f32 %v1678, %v1681
        %vm1683 = vweird.f32 %v1678
        %v1684 = vsel %vm1683, %v1678, %v1682
        %v1685 = vmul.f32 %v1677, %v1684
        %v1686 = vsub.f32 %v1673, %v1685
        %v1687 = vmul.f32 %v1686, %v1686
        %1688 = vadd.xlane.f32.xlu0 %v1687
        %v1689 = vpop.xlane.xlu0 %1688
        %v1690 = vmul.f32 %v1689, %v1684
        %v1691 = vadd.f32 %v1690, 1e-12
        %v1692 = vrsqrt.pop %v1691
        %v1693 = vmul.f32 %v1692, %v1691
        %v1694 = vmul.f32 %v1693, %v1692
        %v1695 = vmul.f32 0.5, %v1694
        %v1696 = vsub.f32 1.5, %v1695
        %v1697 = vmul.f32 %v1692, %v1696
        %vm1698 = vweird.f32 %v1691
        %vm1699 = vweird.f32 %v1692
        %vm1700 = vmor %vm1698, %vm1699
        %v1701 = vsel %vm1700, %v1692, %v1697
        %v1702 = vmul.f32 %v1686, %v1701
        %v1704 = vperm.slane %v1674, 0
        %v1706 = vmul.f32 %v1702, %v1704
        %v1708 = vperm.slane %v1675, 0
        %v1710 = vadd.f32 %v1706, %v1708
        %v1711 = vpack.c.bf16 %v1710, %v1710
        %v1712 = vld [vmem:[%s966] sm:$0xff]
        %v1713 = vld [vmem:[%s966 + $0x8] sm:$0xff]
        %v1714 = vld [vmem:[%s966 + $0x10] sm:$0xff]
        %v1715 = vld [vmem:[%s966 + $0x18] sm:$0xff]
        %v1716 = vld [vmem:[%s966 + $0x20] sm:$0xff]
        %v1717 = vld [vmem:[%s966 + $0x28] sm:$0xff]
        %v1718 = vld [vmem:[%s966 + $0x30] sm:$0xff]
        %v1719 = vld [vmem:[%s966 + $0x38] sm:$0xff]
        %v1720 = vld [vmem:[%s966 + $0x40] sm:$0xff]
        %v1721 = vld [vmem:[%s966 + $0x48] sm:$0xff]
        %v1722 = vld [vmem:[%s966 + $0x50] sm:$0xff]
        %v1723 = vld [vmem:[%s966 + $0x58] sm:$0xff]
        %v1724 = vld [vmem:[%s966 + $0x60] sm:$0xff]
        %v1725 = vld [vmem:[%s966 + $0x68] sm:$0xff]
        %v1726 = vld [vmem:[%s966 + $0x70] sm:$0xff]
        %v1727 = vld [vmem:[%s966 + $0x78] sm:$0xff]
        %v1728 = vld [vmem:[%s1106] sm:$0x3]
        %v1730 = vperm.slane %v1728, 0
        %v1731 = vperm.slane %v1728, 1
        %v1750 = vunpack.c.l.b16 %v1712
        %v1751 = vunpack.c.h.b16 %v1712
        %v1752 = vunpack.c.l.b16 %v1713
        %v1753 = vunpack.c.h.b16 %v1713
        %v1754 = vunpack.c.l.b16 %v1714
        %v1755 = vunpack.c.h.b16 %v1714
        %v1756 = vunpack.c.l.b16 %v1715
        %v1757 = vunpack.c.h.b16 %v1715
        %v1758 = vunpack.c.l.b16 %v1716
        %v1759 = vunpack.c.h.b16 %v1716
        %v1760 = vunpack.c.l.b16 %v1717
        %v1761 = vunpack.c.h.b16 %v1717
        %v1762 = vunpack.c.l.b16 %v1718
        %v1763 = vunpack.c.h.b16 %v1718
        %v1764 = vunpack.c.l.b16 %v1719
        %v1765 = vunpack.c.h.b16 %v1719
        %v1766 = vunpack.c.l.b16 %v1720
        %v1767 = vunpack.c.h.b16 %v1720
        %v1768 = vunpack.c.l.b16 %v1721
        %v1769 = vunpack.c.h.b16 %v1721
        %v1770 = vunpack.c.l.b16 %v1722
        %v1771 = vunpack.c.h.b16 %v1722
        %v1772 = vunpack.c.l.b16 %v1723
        %v1773 = vunpack.c.h.b16 %v1723
        %v1774 = vunpack.c.l.b16 %v1724
        %v1775 = vunpack.c.h.b16 %v1724
        %v1776 = vunpack.c.l.b16 %v1725
        %v1777 = vunpack.c.h.b16 %v1725
        %v1778 = vunpack.c.l.b16 %v1726
        %v1779 = vunpack.c.h.b16 %v1726
        %v1780 = vunpack.c.l.b16 %v1727
        %v1781 = vunpack.c.h.b16 %v1727
        %v1782 = vpack.c.b16 %v1752, %v1750
        %v1783 = vpack.c.b16 %v1753, %v1751
        %v1784 = vpack.c.b16 %v1756, %v1754
        %v1785 = vpack.c.b16 %v1757, %v1755
        %v1786 = vpack.c.b16 %v1760, %v1758
        %v1787 = vpack.c.b16 %v1761, %v1759
        %v1788 = vpack.c.b16 %v1764, %v1762
        %v1789 = vpack.c.b16 %v1765, %v1763
        %v1790 = vpack.c.b16 %v1768, %v1766
        %v1791 = vpack.c.b16 %v1769, %v1767
        %v1792 = vpack.c.b16 %v1772, %v1770
        %v1793 = vpack.c.b16 %v1773, %v1771
        %v1794 = vpack.c.b16 %v1776, %v1774
        %v1795 = vpack.c.b16 %v1777, %v1775
        %v1796 = vpack.c.b16 %v1780, %v1778
        %v1797 = vpack.c.b16 %v1781, %v1779
        %1814 = vmatpush.bf16.msra.mxu0 %v1796
        %1815 = vmatpush.bf16.msra.mxu0 %v1794
        %1816 = vmatpush.bf16.msra.mxu0 %v1792
        %1817 = vmatpush.bf16.msra.mxu0 %v1790
        %1818 = vmatpush.bf16.msra.mxu0 %v1788
        %1819 = vmatpush.bf16.msra.mxu0 %v1786
        %1820 = vmatpush.bf16.msra.mxu0 %v1784
        %1821 = vmatpush.bf16.msra.mxu0 %v1782
        %1822 = vmatmul.bf16.gmra.mxu0 %v1711
        %v1823 = vpop.f32.mrf.mxu0
        %v1824 = vadd.f32 %v1730, %v1823
        %v1825 = vpop.f32.mrf.mxu0
        %1826 = vdwg.mxu0
        %1827 = vmatpush.bf16.msra.mxu0 %v1797
        %1828 = vmatpush.bf16.msra.mxu0 %v1795
        %1829 = vmatpush.bf16.msra.mxu0 %v1793
        %1830 = vmatpush.bf16.msra.mxu0 %v1791
        %1831 = vmatpush.bf16.msra.mxu0 %v1789
        %1832 = vmatpush.bf16.msra.mxu0 %v1787
        %1833 = vmatpush.bf16.msra.mxu0 %v1785
        %1834 = vmatpush.bf16.msra.mxu0 %v1783
        %1835 = vmatmul.bf16.gmra.mxu0 %v1711
        %v1836 = vpop.f32.mrf.mxu0
        %v1837 = vadd.f32 %v1731, %v1836
        %v1838 = vpop.f32.mrf.mxu0
        %1839 = vdwg.mxu0
        %v1840 = vmul.f32 %v1824, %v1824
        %v1841 = vmul.f32 %v1837, %v1837
        %v1842 = vmul.f32 %v1824, %v1840
        %v1843 = vmul.f32 %v1837, %v1841
        %v1844 = vmul.f32 %v1842, 0.044715
        %v1845 = vmul.f32 %v1843, 0.044715
        %v1846 = vadd.f32 %v1824, %v1844
        %v1847 = vadd.f32 %v1837, %v1845
        %v1848 = vmul.f32 %v1846, 0.7978846
        %v1849 = vmul.f32 %v1847, 0.7978846
        %v1850 = vtanh.pop %v1848
        %v1851 = vtanh.pop %v1849
        %v1852 = vadd.f32 %v1850, 1.0
        %v1853 = vadd.f32 %v1851, 1.0
        %v1854 = vmul.f32 %v1852, 0.5
        %v1855 = vmul.f32 %v1853, 0.5
        %v1856 = vmul.f32 %v1824, %v1854
        %v1857 = vmul.f32 %v1837, %v1855
        %v1858 = vpack.c.bf16 %v1856, %v1856
        %v1859 = vpack.c.bf16 %v1857, %v1857
        %v1860 = vld [vmem:[%s976] sm:$0xf]
        %v1861 = vld [vmem:[%s976 + $0x4] sm:$0xf]
        %v1862 = vld [vmem:[%s976 + $0x8] sm:$0xf]
        %v1863 = vld [vmem:[%s976 + $0xc] sm:$0xf]
        %v1864 = vld [vmem:[%s976 + $0x10] sm:$0xf]
        %v1865 = vld [vmem:[%s976 + $0x14] sm:$0xf]
        %v1866 = vld [vmem:[%s976 + $0x18] sm:$0xf]
        %v1867 = vld [vmem:[%s976 + $0x1c] sm:$0xf]
        %v1868 = vld [vmem:[%s976 + $0x20] sm:$0xf]
        %v1869 = vld [vmem:[%s976 + $0x24] sm:$0xf]
        %v1870 = vld [vmem:[%s976 + $0x28] sm:$0xf]
        %v1871 = vld [vmem:[%s976 + $0x2c] sm:$0xf]
        %v1872 = vld [vmem:[%s976 + $0x30] sm:$0xf]
        %v1873 = vld [vmem:[%s976 + $0x34] sm:$0xf]
        %v1874 = vld [vmem:[%s976 + $0x38] sm:$0xf]
        %v1875 = vld [vmem:[%s976 + $0x3c] sm:$0xf]
        %v1876 = vld [vmem:[%s976 + $0x40] sm:$0xf]
        %v1877 = vld [vmem:[%s976 + $0x44] sm:$0xf]
        %v1878 = vld [vmem:[%s976 + $0x48] sm:$0xf]
        %v1879 = vld [vmem:[%s976 + $0x4c] sm:$0xf]
        %v1880 = vld [vmem:[%s976 + $0x50] sm:$0xf]
        %v1881 = vld [vmem:[%s976 + $0x54] sm:$0xf]
        %v1882 = vld [vmem:[%s976 + $0x58] sm:$0xf]
        %v1883 = vld [vmem:[%s976 + $0x5c] sm:$0xf]
        %v1884 = vld [vmem:[%s976 + $0x60] sm:$0xf]
        %v1885 = vld [vmem:[%s976 + $0x64] sm:$0xf]
        %v1886 = vld [vmem:[%s976 + $0x68] sm:$0xf]
        %v1887 = vld [vmem:[%s976 + $0x6c] sm:$0xf]
        %v1888 = vld [vmem:[%s976 + $0x70] sm:$0xf]
        %v1889 = vld [vmem:[%s976 + $0x74] sm:$0xf]
        %v1890 = vld [vmem:[%s976 + $0x78] sm:$0xf]
        %v1891 = vld [vmem:[%s976 + $0x7c] sm:$0xf]
        %v1892 = vld [vmem:[%s1109] sm:$0x1]
        %v1894 = vperm.slane %v1892, 0
        %v1928 = vunpack.c.l.b16 %v1860
        %v1929 = vunpack.c.l.b16 %v1861
        %v1930 = vunpack.c.l.b16 %v1862
        %v1931 = vunpack.c.l.b16 %v1863
        %v1932 = vunpack.c.l.b16 %v1864
        %v1933 = vunpack.c.l.b16 %v1865
        %v1934 = vunpack.c.l.b16 %v1866
        %v1935 = vunpack.c.l.b16 %v1867
        %v1936 = vunpack.c.l.b16 %v1868
        %v1937 = vunpack.c.l.b16 %v1869
        %v1938 = vunpack.c.l.b16 %v1870
        %v1939 = vunpack.c.l.b16 %v1871
        %v1940 = vunpack.c.l.b16 %v1872
        %v1941 = vunpack.c.l.b16 %v1873
        %v1942 = vunpack.c.l.b16 %v1874
        %v1943 = vunpack.c.l.b16 %v1875
        %v1944 = vunpack.c.l.b16 %v1876
        %v1945 = vunpack.c.l.b16 %v1877
        %v1946 = vunpack.c.l.b16 %v1878
        %v1947 = vunpack.c.l.b16 %v1879
        %v1948 = vunpack.c.l.b16 %v1880
        %v1949 = vunpack.c.l.b16 %v1881
        %v1950 = vunpack.c.l.b16 %v1882
        %v1951 = vunpack.c.l.b16 %v1883
        %v1952 = vunpack.c.l.b16 %v1884
        %v1953 = vunpack.c.l.b16 %v1885
        %v1954 = vunpack.c.l.b16 %v1886
        %v1955 = vunpack.c.l.b16 %v1887
        %v1956 = vunpack.c.l.b16 %v1888
        %v1957 = vunpack.c.l.b16 %v1889
        %v1958 = vunpack.c.l.b16 %v1890
        %v1959 = vunpack.c.l.b16 %v1891
        %v1960 = vpack.c.b16 %v1929, %v1928
        %v1961 = vpack.c.b16 %v1931, %v1930
        %v1962 = vpack.c.b16 %v1933, %v1932
        %v1963 = vpack.c.b16 %v1935, %v1934
        %v1964 = vpack.c.b16 %v1937, %v1936
        %v1965 = vpack.c.b16 %v1939, %v1938
        %v1966 = vpack.c.b16 %v1941, %v1940
        %v1967 = vpack.c.b16 %v1943, %v1942
        %v1968 = vpack.c.b16 %v1945, %v1944
        %v1969 = vpack.c.b16 %v1947, %v1946
        %v1970 = vpack.c.b16 %v1949, %v1948
        %v1971 = vpack.c.b16 %v1951, %v1950
        %v1972 = vpack.c.b16 %v1953, %v1952
        %v1973 = vpack.c.b16 %v1955, %v1954
        %v1974 = vpack.c.b16 %v1957, %v1956
        %v1975 = vpack.c.b16 %v1959, %v1958
        %1992 = vmatpush.bf16.msra.mxu0 %v1967
        %1993 = vmatpush.bf16.msra.mxu0 %v1966
        %1994 = vmatpush.bf16.msra.mxu0 %v1965
        %1995 = vmatpush.bf16.msra.mxu0 %v1964
        %1996 = vmatpush.bf16.msra.mxu0 %v1963
        %1997 = vmatpush.bf16.msra.mxu0 %v1962
        %1998 = vmatpush.bf16.msra.mxu0 %v1961
        %1999 = vmatpush.bf16.msra.mxu0 %v1960
        %2000 = vmatmul.bf16.gmra.mxu0 %v1858
        %v2001 = vpop.f32.mrf.mxu0
        %v2002 = vadd.f32 %v1894, %v2001
        %v2003 = vpop.f32.mrf.mxu0
        %2004 = vdwg.mxu0
        %2005 = vmatpush.bf16.msra.mxu0 %v1975
        %2006 = vmatpush.bf16.msra.mxu0 %v1974
        %2007 = vmatpush.bf16.msra.mxu0 %v1973
        %2008 = vmatpush.bf16.msra.mxu0 %v1972
        %2009 = vmatpush.bf16.msra.mxu0 %v1971
        %2010 = vmatpush.bf16.msra.mxu0 %v1970
        %2011 = vmatpush.bf16.msra.mxu0 %v1969
        %2012 = vmatpush.bf16.msra.mxu0 %v1968
        %2013 = vmatmul.bf16.gmra.mxu0 %v1859
        %v2014 = vpop.f32.mrf.mxu0
        %v2015 = vadd.f32 %v2002, %v2014
        %v2016 = vpop.f32.mrf.mxu0
        %2017 = vdwg.mxu0
        %v2018 = vadd.f32 %v1710, %v2015
        %v2019 = vld [vmem:[%s1112] sm:$0x1]
        %v2020 = vld [vmem:[%s1115] sm:$0x1]
        %2021 = vadd.xlane.f32.xlu0 %v2018
        %v2022 = vpop.xlane.xlu0 %2021
        %v2023 = vmul.f32 %v2022, %v1684
        %v2024 = vsub.f32 %v2018, %v2023
        %v2025 = vmul.f32 %v2024, %v2024
        %2026 = vadd.xlane.f32.xlu0 %v2025
        %v2027 = vpop.xlane.xlu0 %2026
        %v2028 = vmul.f32 %v2027, %v1684
        %v2029 = vadd.f32 %v2028, 1e-12
        %v2030 = vrsqrt.pop %v2029
        %v2031 = vmul.f32 %v2030, %v2029
        %v2032 = vmul.f32 %v2031, %v2030
        %v2033 = vmul.f32 0.5, %v2032
        %v2034 = vsub.f32 1.5, %v2033
        %v2035 = vmul.f32 %v2030, %v2034
        %vm2036 = vweird.f32 %v2029
        %vm2037 = vweird.f32 %v2030
        %vm2038 = vmor %vm2036, %vm2037
        %v2039 = vsel %vm2038, %v2030, %v2035
        %v2040 = vmul.f32 %v2024, %v2039
        %v2042 = vperm.slane %v2019, 0
        %v2044 = vmul.f32 %v2040, %v2042
        %v2046 = vperm.slane %v2020, 0
        %v2048 = vadd.f32 %v2044, %v2046
        %2049 = vst [vmem:[#allocation2] sm:$0xff] %v2048
        %p2050 = scmp.eq.s32.totalorder %s57, 1
        // Predicated region
        $region161: #{tpu_custom_call.1} parent=103 // pred_check
          %p2051 = pneg %p2050
        $region162: #{tpu_custom_call.1} parent=103 // pred_check_branch
          %2053 = sbr.rel (%p2051) target = $region164
        $region163: #{tpu_custom_call.1} parent=103 // pred_region
          %v2054 = vpack.c.bf16 %v2048, %v2048
          %v2055 = vld [vmem:[#allocation22] sm:$0xf]
          %v2056 = vld [vmem:[#allocation22 + $0x4] sm:$0xf]
          %v2057 = vld [vmem:[#allocation22 + $0x8] sm:$0xf]
          %v2058 = vld [vmem:[#allocation22 + $0xc] sm:$0xf]
          %v2059 = vld [vmem:[#allocation22 + $0x10] sm:$0xf]
          %v2060 = vld [vmem:[#allocation22 + $0x14] sm:$0xf]
          %v2061 = vld [vmem:[#allocation22 + $0x18] sm:$0xf]
          %v2062 = vld [vmem:[#allocation22 + $0x1c] sm:$0xf]
          %v2063 = vld [vmem:[#allocation22 + $0x20] sm:$0xf]
          %v2064 = vld [vmem:[#allocation22 + $0x24] sm:$0xf]
          %v2065 = vld [vmem:[#allocation22 + $0x28] sm:$0xf]
          %v2066 = vld [vmem:[#allocation22 + $0x2c] sm:$0xf]
          %v2067 = vld [vmem:[#allocation22 + $0x30] sm:$0xf]
          %v2068 = vld [vmem:[#allocation22 + $0x34] sm:$0xf]
          %v2069 = vld [vmem:[#allocation22 + $0x38] sm:$0xf]
          %v2070 = vld [vmem:[#allocation22 + $0x3c] sm:$0xf]
          %v2071 = vld [vmem:[%s18] sm:$0x1]
          %v2088 = vunpack.c.l.b16 %v2055
          %v2089 = vunpack.c.l.b16 %v2056
          %v2090 = vunpack.c.l.b16 %v2057
          %v2091 = vunpack.c.l.b16 %v2058
          %v2092 = vunpack.c.l.b16 %v2059
          %v2093 = vunpack.c.l.b16 %v2060
          %v2094 = vunpack.c.l.b16 %v2061
          %v2095 = vunpack.c.l.b16 %v2062
          %v2096 = vunpack.c.l.b16 %v2063
          %v2097 = vunpack.c.l.b16 %v2064
          %v2098 = vunpack.c.l.b16 %v2065
          %v2099 = vunpack.c.l.b16 %v2066
          %v2100 = vunpack.c.l.b16 %v2067
          %v2101 = vunpack.c.l.b16 %v2068
          %v2102 = vunpack.c.l.b16 %v2069
          %v2103 = vunpack.c.l.b16 %v2070
          %v2104 = vpack.c.b16 %v2089, %v2088
          %v2105 = vpack.c.b16 %v2091, %v2090
          %v2106 = vpack.c.b16 %v2093, %v2092
          %v2107 = vpack.c.b16 %v2095, %v2094
          %v2108 = vpack.c.b16 %v2097, %v2096
          %v2109 = vpack.c.b16 %v2099, %v2098
          %v2110 = vpack.c.b16 %v2101, %v2100
          %v2111 = vpack.c.b16 %v2103, %v2102
          %2120 = vmatpush.bf16.msra.mxu0 %v2111
          %2121 = vmatpush.bf16.msra.mxu0 %v2110
          %2122 = vmatpush.bf16.msra.mxu0 %v2109
          %2123 = vmatpush.bf16.msra.mxu0 %v2108
          %2124 = vmatpush.bf16.msra.mxu0 %v2107
          %2125 = vmatpush.bf16.msra.mxu0 %v2106
          %2126 = vmatpush.bf16.msra.mxu0 %v2105
          %2127 = vmatpush.bf16.msra.mxu0 %v2104
          %2128 = vmatmul.bf16.gmra.mxu0 %v2054
          %v2129 = vpop.f32.mrf.mxu0
          %v2130 = vadd.f32 %v2071, %v2129
          %v2131 = vpop.f32.mrf.mxu0
          %2132 = vdwg.mxu0
          %v2133 = vtanh.pop %v2130
          %v2134 = vpack.c.bf16 %v2133, %v2133
          %v2135 = vld [vmem:[#allocation24] sm:$0xf]
          %v2136 = vld [vmem:[#allocation24 + $0x4] sm:$0xf]
          %v2137 = vld [vmem:[#allocation24 + $0x8] sm:$0xf]
          %v2138 = vld [vmem:[#allocation24 + $0xc] sm:$0xf]
          %v2139 = vld [vmem:[#allocation24 + $0x10] sm:$0xf]
          %v2140 = vld [vmem:[#allocation24 + $0x14] sm:$0xf]
          %v2141 = vld [vmem:[#allocation24 + $0x18] sm:$0xf]
          %v2142 = vld [vmem:[#allocation24 + $0x1c] sm:$0xf]
          %v2143 = vld [vmem:[#allocation24 + $0x20] sm:$0xf]
          %v2144 = vld [vmem:[#allocation24 + $0x24] sm:$0xf]
          %v2145 = vld [vmem:[#allocation24 + $0x28] sm:$0xf]
          %v2146 = vld [vmem:[#allocation24 + $0x2c] sm:$0xf]
          %v2147 = vld [vmem:[#allocation24 + $0x30] sm:$0xf]
          %v2148 = vld [vmem:[#allocation24 + $0x34] sm:$0xf]
          %v2149 = vld [vmem:[#allocation24 + $0x38] sm:$0xf]
          %v2150 = vld [vmem:[#allocation24 + $0x3c] sm:$0xf]
          %v2151 = vld [vmem:[%s20] sm:$0x1]
          %v2168 = vunpack.c.l.b16 %v2135
          %v2169 = vunpack.c.l.b16 %v2136
          %v2170 = vunpack.c.l.b16 %v2137
          %v2171 = vunpack.c.l.b16 %v2138
          %v2172 = vunpack.c.l.b16 %v2139
          %v2173 = vunpack.c.l.b16 %v2140
          %v2174 = vunpack.c.l.b16 %v2141
          %v2175 = vunpack.c.l.b16 %v2142
          %v2176 = vunpack.c.l.b16 %v2143
          %v2177 = vunpack.c.l.b16 %v2144
          %v2178 = vunpack.c.l.b16 %v2145
          %v2179 = vunpack.c.l.b16 %v2146
          %v2180 = vunpack.c.l.b16 %v2147
          %v2181 = vunpack.c.l.b16 %v2148
          %v2182 = vunpack.c.l.b16 %v2149
          %v2183 = vunpack.c.l.b16 %v2150
          %v2184 = vpack.c.b16 %v2169, %v2168
          %v2185 = vpack.c.b16 %v2171, %v2170
          %v2186 = vpack.c.b16 %v2173, %v2172
          %v2187 = vpack.c.b16 %v2175, %v2174
          %v2188 = vpack.c.b16 %v2177, %v2176
          %v2189 = vpack.c.b16 %v2179, %v2178
          %v2190 = vpack.c.b16 %v2181, %v2180
          %v2191 = vpack.c.b16 %v2183, %v2182
          %2200 = vmatpush.bf16.msra.mxu0 %v2191
          %2201 = vmatpush.bf16.msra.mxu0 %v2190
          %2202 = vmatpush.bf16.msra.mxu0 %v2189
          %2203 = vmatpush.bf16.msra.mxu0 %v2188
          %2204 = vmatpush.bf16.msra.mxu0 %v2187
          %2205 = vmatpush.bf16.msra.mxu0 %v2186
          %2206 = vmatpush.bf16.msra.mxu0 %v2185
          %2207 = vmatpush.bf16.msra.mxu0 %v2184
          %2208 = vmatmul.bf16.gmra.mxu0 %v2134
          %v2209 = vpop.f32.mrf.mxu0
          %v2210 = vadd.f32 %v2151, %v2209
          %v2211 = vpop.f32.mrf.mxu0
          %2212 = vdwg.mxu0
          %2213 = vst [vmem:[%s1096] sm:$0x1] %v2210
        $region164: #{tpu_custom_call.1} parent=103 // pred_fallthru
          _
        %s2214 = sand.u32 %s583, 1
        %s2215 = scalar_lea.sflag [#allocation6], %s2214
        %s2216 = sand.u32 %s583, 1
        %s2217 = scalar_lea.vmem [#allocation25], %s2216
        // Predicated region
        $region165: #{tpu_custom_call.1} parent=103 // pred_check
          %p2218 = pneg %p593
        $region166: #{tpu_custom_call.1} parent=103 // pred_check_branch
          %2220 = sbr.rel (%p2218) target = $region168
        $region167: #{tpu_custom_call.1} parent=103 // pred_region
          %2222 = vsyncadd %s2215, 0
          %s2223 = scalar_lea.hbm %s21, %s56
          %s2225 = sshll.u32 %s2217, 4
          %s2226 = int_to_ptr.vmem [resolvable:$true] %s2225
          %s2227 = sshll.u32 %s2223, 4
          %s2228 = int_to_ptr.hbm [resolvable:$true] %s2227
          %2230 = dma.vmem_to_hbm [thread:$0]  %s2226, 16, %s2228, %s2215
        $region168: #{tpu_custom_call.1} parent=103 // pred_fallthru
          _
      $region104: #{tpu_custom_call.1} parent=5 // pred_fallthru
        _
      %p2231 = scmp.le.s32.totalorder 2, %s47
      // Predicated region
      $region169: #{tpu_custom_call.1} parent=5 // pred_check
        %p2232 = pneg %p2231
      $region170: #{tpu_custom_call.1} parent=5 // pred_check_branch
        %2234 = sbr.rel (%p2232) target = $region172
      $region171: #{tpu_custom_call.1} parent=5 // pred_region
        %s2235 = ssub.s32 %s47, 2
        // Predicated region
        $region173: #{tpu_custom_call.1} parent=171 // pred_check
          %p2236 = pneg %p599
        $region174: #{tpu_custom_call.1} parent=171 // pred_check_branch
          %2238 = sbr.rel (%p2236) target = $region176
        $region175: #{tpu_custom_call.1} parent=171 // pred_region
          %s2239 = sand.u32 %s584, 1
          %s2240 = scalar_lea.sflag [#allocation6], %s2239
          %s2241 = sand.u32 %s584, 1
          %s2242 = scalar_lea.vmem [#allocation25], %s2241
          %2244 = dma.done %s2240, 16
        $region176: #{tpu_custom_call.1} parent=171 // pred_fallthru
          _
      $region172: #{tpu_custom_call.1} parent=5 // pred_fallthru
        _
    $region6: #{tpu_custom_call.1} parent=1 // loop_footer
      %s51 = sadd.s32 1, %s47
    $region7: #{tpu_custom_call.1} parent=1 // loop_footer_branch
      %46 = sbr.rel target = $region3
    $region8: #{tpu_custom_call.1} parent=1 // loop_exit
      _
    %2245 = vsyncpa [#allocation5], 1
    %s2246 = scalar_lea.sflag [#allocation5], 1
    %2247 = vsyncpa %s2246, 1
    %2248 = vsyncpa [#allocation8], 1
    %s2249 = scalar_lea.sflag [#allocation8], 1
    %2250 = vsyncpa %s2249, 1
    %2251 = vsyncpa [#allocation11], 1
    %2252 = vsyncpa [#allocation14], 1
    %s2253 = scalar_lea.sflag [#allocation14], 1
    %2254 = vsyncpa %s2253, 1
    %2255 = vsyncpa [#allocation17], 1
    %s2256 = scalar_lea.sflag [#allocation17], 1
    %2257 = vsyncpa %s2256, 1
    %2258 = vsyncpa [#allocation20], 1
    %s2259 = scalar_lea.sflag [#allocation20], 1
    %2260 = vsyncpa %s2259, 1
    %2261 = vsyncpa [#allocation23], 1
    %2262 = vsyncpa [#allocation6], 1
    %s2263 = scalar_lea.sflag [#allocation6], 1
    %2264 = vsyncpa %s2263, 1

</llo_original>
